<compile_context>
chip_gen: v6e
topology: v6e:2x2x1
jax: 0.10.0
libtpu: 0.0.40
codegen_flags: <defaults>
</compile_context>

<pallas_src>
import jax
import jax.numpy as jnp
from jax.experimental import pallas as pl
from jax.experimental.pallas import tpu as pltpu


def _round_up(x, m):
    return ((x + m - 1) // m) * m


def _attn_gru_kernel(
    emb_ref,      # (S, TB, Hp)  f32   token embeddings (lane-dense)
    h0_ref,       # (TB, Hp)     f32   previous hidden state tile
    att_w_ref,    # (2*Hp, Hp)   bf16  [W_mix ; W_a] row-stacked (concat-free combine)
    w_ih_ref,     # (Hp, 3*Hp)   bf16  GRU input weights, gates (r|z|n) along lanes
    w_hh_ref,     # (Hp, 3*Hp)   bf16  GRU hidden weights, gates (r|z|n) along lanes
    bias_ref,     # (3, 3*Hp)    f32   row0=[att_b,0,0], row1=b_ih(rzn), row2=b_hh(rzn)
    h_out_ref,    # (TB, Hp)     f32   new hidden (== GRU output for the single step)
    attn_out_ref, # (TB, S)      f32   attention weights, batch-major
):
    S, TB, Hp = emb_ref.shape
    f32 = jnp.float32
    bf16 = jnp.bfloat16
    unroll = S <= 16

    a = h0_ref[...]                                             # (TB, Hp) f32
    lane_s = jax.lax.broadcasted_iota(jnp.int32, (TB, S), 1)    # seq index per lane

    # --- 1) attention scores, streamed one (TB, Hp) emb slab at a time (VPU) ---
    def score_step(s, scores):
        e_s = emb_ref[s]                                        # (TB, Hp) f32
        sc = jnp.sum(e_s * a, axis=-1, keepdims=True)           # (TB, 1)
        return jnp.where(lane_s == s, sc, scores)               # drop into lane s

    scores = jax.lax.fori_loop(0, S, score_step,
                               jnp.zeros((TB, S), f32), unroll=unroll)

    # stabilized softmax over the sequence (lane) axis, all f32 VPU/EUP work
    scores = scores - jnp.max(scores, axis=-1, keepdims=True)
    e = jnp.exp(scores)
    inv_l = pl.reciprocal(jnp.sum(e, axis=-1, keepdims=True), approx=True)
    attn = e * inv_l                                            # (TB, S)
    attn_out_ref[...] = attn.astype(attn_out_ref.dtype)

    # --- 2) context mix = sum_s attn[:, s] * emb[s], second streamed pass ------
    def mix_step(s, acc):
        e_s = emb_ref[s]                                        # (TB, Hp)
        w = jnp.sum(jnp.where(lane_s == s, attn, 0.0),
                    axis=-1, keepdims=True)                     # (TB, 1) == attn[:, s]
        return acc + w * e_s

    mix = jax.lax.fori_loop(0, S, mix_step,
                            jnp.zeros((TB, Hp), f32), unroll=unroll)

    # --- 3) combine: ONE (TB, 2Hp) @ (2Hp, Hp) MXU matmul (bf16 in, f32 acc) ---
    mixa = jnp.concatenate([mix, a], axis=-1).astype(bf16)      # lane-aligned concat
    att_b = bias_ref[0:1, 0:Hp]                                 # (1, Hp)
    att_out = jnp.tanh(
        jnp.dot(mixa, att_w_ref[...], preferred_element_type=f32) + att_b)  # (TB, Hp)

    # --- 4) single-step GRU: two fused gate matmuls (gates r|z|n along lanes) --
    gi = jnp.dot(att_out.astype(bf16), w_ih_ref[...],
                 preferred_element_type=f32) + bias_ref[1:2, :]             # (TB, 3Hp)
    gh = jnp.dot(a.astype(bf16), w_hh_ref[...],
                 preferred_element_type=f32) + bias_ref[2:3, :]             # (TB, 3Hp)

    r = jax.nn.sigmoid(gi[:, 0:Hp] + gh[:, 0:Hp])
    z = jax.nn.sigmoid(gi[:, Hp:2 * Hp] + gh[:, Hp:2 * Hp])
    n = jnp.tanh(gi[:, 2 * Hp:] + r * gh[:, 2 * Hp:])
    h_new = (1.0 - z) * n + z * a                               # (TB, Hp) f32

    h_out_ref[...] = h_new.astype(h_out_ref.dtype)


def prepare_params(params):
    """One-time weight re-layout: pad to lane width, transpose, stack gates, cast
    MXU operands to bf16.  Hoisted out of the per-token forward (review item 8)."""
    H = params["emb_w"].shape[0]
    Hp = _round_up(H, 128)
    f32, bf16 = jnp.float32, jnp.bfloat16

    def pad_mat(w, rows, cols):
        return jnp.pad(w.astype(f32), ((0, rows - w.shape[0]), (0, cols - w.shape[1])))

    def pad_vec(v, n):
        return jnp.pad(v.astype(f32), (0, n - v.shape[0]))

    # embedding Linear (I -> H), transposed, H padded to lane width (used in wrapper)
    emb_w_t = jnp.pad(params["emb_w"].T.astype(f32), ((0, 0), (0, Hp - H)))     # (I, Hp)

    # attention linear_out (2H -> H): [W_mix ; W_a] row-stacked -> (2Hp, Hp)
    att_w = params["att_w"].astype(f32)                                          # (H, 2H)
    att_w_all = jnp.concatenate([pad_mat(att_w[:, :H].T, Hp, Hp),
                                 pad_mat(att_w[:, H:].T, Hp, Hp)], axis=0)

    # GRU weights: per-gate (r, z, n), transposed, column-stacked -> (Hp, 3Hp)
    w_ih = params["w_ih"].astype(f32)                                            # (3H, H)
    w_hh = params["w_hh"].astype(f32)
    w_ih_all = jnp.concatenate(
        [pad_mat(w_ih[g * H:(g + 1) * H, :].T, Hp, Hp) for g in range(3)], axis=1)
    w_hh_all = jnp.concatenate(
        [pad_mat(w_hh[g * H:(g + 1) * H, :].T, Hp, Hp) for g in range(3)], axis=1)

    b_ih = jnp.concatenate([pad_vec(params["b_ih"][g * H:(g + 1) * H], Hp) for g in range(3)])
    b_hh = jnp.concatenate([pad_vec(params["b_hh"][g * H:(g + 1) * H], Hp) for g in range(3)])
    att_b = pad_vec(params["att_b"], 3 * Hp)
    bias_all = jnp.stack([att_b, b_ih, b_hh])                                    # (3, 3Hp)

    return {
        "H": H, "Hp": Hp,
        "emb_w_t": emb_w_t.astype(bf16),       # (I, Hp) bf16 (wrapper MXU operand)
        "emb_b": pad_vec(params["emb_b"], Hp), # (Hp,) f32
        "att_w_all": att_w_all.astype(bf16),   # (2Hp, Hp)
        "w_ih_all": w_ih_all.astype(bf16),     # (Hp, 3Hp)
        "w_hh_all": w_hh_all.astype(bf16),     # (Hp, 3Hp)
        "bias_all": bias_all,                  # (3, 3Hp) f32
    }


def attn_decoder_forward(prep, inp, hidden, encoder_outputs=None):
    """inp: [S, B, I] f32, hidden: [1, B, H] f32 (PyTorch layout).

    encoder_outputs is accepted for interface parity but — exactly as in the
    PyTorch forward — never used (the module attends over its own embedding).
    """
    S, B, I = inp.shape
    H, Hp = prep["H"], prep["Hp"]
    f32, bf16 = jnp.float32, jnp.bfloat16

    # Batch tiling.  Prefer >=2 tiles so both v7x TensorCores get work under
    # dimension_semantics=("parallel",); the extra grid step costs ~0.35us on
    # single-TC v5e/v6e (negligible).  Padded rows compute finite garbage that
    # is sliced off below.
    if B > 128:
        TB = 128
    elif B >= 16:
        TB = _round_up((B + 1) // 2, 8)
    else:
        TB = _round_up(max(B, 1), 8)
    B_pad = _round_up(B, TB)

    # Token-wise embedding Linear done here (bf16 MXU operands, f32 accumulate):
    # feeding the kernel lane-dense (S, B, Hp) activations removes the
    # lane-sparse I=16 input tile and the K=16 underfilled in-kernel dot.
    emb = jnp.dot(inp.astype(f32).reshape(S * B, I).astype(bf16), prep["emb_w_t"],
                  preferred_element_type=f32) + prep["emb_b"]
    emb = emb.reshape(S, B, Hp)
    if B_pad != B:
        emb = jnp.pad(emb, ((0, 0), (0, B_pad - B), (0, 0)))
    h0 = jnp.pad(hidden[0].astype(f32), ((0, B_pad - B), (0, Hp - H)))           # (B_pad, Hp)

    # explicit scoped-VMEM budget from tile sizes (2x double buffer, 2x headroom)
    blk_bytes = (
        S * TB * Hp * 4                               # emb tile
        + TB * Hp * 4                                 # h0 tile
        + (2 * Hp * Hp + 2 * Hp * 3 * Hp) * 2         # bf16 weights
        + 3 * 3 * Hp * 4                              # biases
        + TB * Hp * 4                                 # h_out tile
        + TB * max(S, 128) * 4                        # attn tile (lane-padded)
    )
    vmem_limit = int(min(56 * 2 ** 20, max(24 * 2 ** 20, 4 * blk_bytes)))

    h_out, attn_out = pl.pallas_call(
        _attn_gru_kernel,
        grid=(B_pad // TB,),
        in_specs=[
            pl.BlockSpec((S, TB, Hp), lambda b: (0, b, 0)),     # emb tile
            pl.BlockSpec((TB, Hp), lambda b: (b, 0)),           # hidden tile
            # shared (constant-index) weight / bias operands:
            pl.BlockSpec((2 * Hp, Hp), lambda b: (0, 0)),
            pl.BlockSpec((Hp, 3 * Hp), lambda b: (0, 0)),
            pl.BlockSpec((Hp, 3 * Hp), lambda b: (0, 0)),
            pl.BlockSpec((3, 3 * Hp), lambda b: (0, 0)),
        ],
        out_specs=[
            pl.BlockSpec((TB, Hp), lambda b: (b, 0)),           # lane-dense h_new store
            pl.BlockSpec((TB, S), lambda b: (b, 0)),            # attn weights, batch-major
        ],
        out_shape=[
            jax.ShapeDtypeStruct((B_pad, Hp), f32),
            jax.ShapeDtypeStruct((B_pad, S), f32),
        ],
        compiler_params=pltpu.CompilerParams(
            dimension_semantics=("parallel",),
            vmem_limit_bytes=vmem_limit,
        ),
    )(emb, h0, prep["att_w_all"], prep["w_ih_all"], prep["w_hh_all"], prep["bias_all"])

    h_new = h_out[:B, :H]                              # drop batch / hidden padding
    hidden_new = h_new[None]                           # [1, B, H]
    output = hidden_new                                # single GRU step: output == new hidden
    attn_weights = attn_out[:B, None, :]               # [B, 1, S] — no transpose needed
    return output, hidden_new, attn_weights


def _reference_forward(params, inp, hidden):
    """Pure-JAX reference of the same forward pass (f32, HIGHEST-precision dots)."""
    S, B, I = inp.shape
    H = params["emb_w"].shape[0]
    hp = jax.lax.Precision.HIGHEST
    emb = (jnp.dot(inp.reshape(-1, I), params["emb_w"].T, precision=hp)
           + params["emb_b"]).reshape(S, B, H)
    a = jnp.transpose(hidden, (1, 0, 2))    # [B, 1, H]
    b = jnp.transpose(emb, (1, 0, 2))       # [B, S, H]
    scores = jnp.einsum("bih,bsh->bis", a, b, precision=hp)
    attn = jax.nn.softmax(scores, axis=-1)                               # [B, 1, S]
    mix = jnp.einsum("bis,bsh->bih", attn, b, precision=hp)              # [B, 1, H]
    combined = jnp.concatenate([mix, a], axis=-1)                        # [B, 1, 2H]
    att_out = jnp.tanh(jnp.dot(combined, params["att_w"].T, precision=hp)
                       + params["att_b"])                                # [B, 1, H]
    x = att_out[:, 0, :]
    h = hidden[0]
    gi = jnp.dot(x, params["w_ih"].T, precision=hp) + params["b_ih"]
    gh = jnp.dot(h, params["w_hh"].T, precision=hp) + params["b_hh"]
    r = jax.nn.sigmoid(gi[:, :H] + gh[:, :H])
    z = jax.nn.sigmoid(gi[:, H:2 * H] + gh[:, H:2 * H])
    n = jnp.tanh(gi[:, 2 * H:] + r * gh[:, 2 * H:])
    h_new = (1.0 - z) * n + z * h
    return h_new[None], h_new[None], attn


def init_params(key, input_size, hidden_size, output_size):
    """Deterministic PyTorch-style U(-1/sqrt(fan_in), 1/sqrt(fan_in)) init."""
    ks = jax.random.split(key, 10)
    H, I, O = hidden_size, input_size, output_size

    def u(k, shape, fan_in):
        bound = 1.0 / jnp.sqrt(jnp.float32(fan_in))
        return jax.random.uniform(k, shape, jnp.float32, -bound, bound)

    params = {
        "emb_w": u(ks[0], (H, I), I),           # nn.Linear(input_size, hidden)
        "emb_b": u(ks[1], (H,), I),
        "att_w": u(ks[2], (H, 2 * H), 2 * H),   # Attention.linear_out
        "att_b": u(ks[3], (H,), 2 * H),
        "w_ih": u(ks[4], (3 * H, H), H),        # GRU weight_ih_l0 (gates r,z,n)
        "w_hh": u(ks[5], (3 * H, H), H),        # GRU weight_hh_l0
        "b_ih": u(ks[6], (3 * H,), H),
        "b_hh": u(ks[7], (3 * H,), H),
        # self.out (Linear(H, O)) and self.dropout are unused in forward:
        "out_w": u(ks[8], (O, H), H),
        "out_b": u(ks[9], (O,), H),
        # TODO(synk): dropout_p / self.out are dead in the module forward; not applied.
    }
    return params


def _check(prep, params, inp, hidden, batch, seq_len, hidden_size):
    output, hidden_new, attn_weights = attn_decoder_forward(prep, inp, hidden)
    jax.block_until_ready((output, hidden_new, attn_weights))
    out_ref, hid_ref, attn_ref = _reference_forward(params, inp, hidden)
    assert output.shape == (1, batch, hidden_size)
    assert hidden_new.shape == (1, batch, hidden_size)
    assert attn_weights.shape == (batch, 1, seq_len)
    # bf16 MXU operands (f32 accumulate) -> loosen the all-f32 reference tolerance
    assert jnp.allclose(output, out_ref, atol=3e-2, rtol=3e-2)
    assert jnp.allclose(hidden_new, hid_ref, atol=3e-2, rtol=3e-2)
    assert jnp.allclose(attn_weights, attn_ref, atol=3e-2, rtol=3e-2)


if __name__ == "__main__":
    seq_len, batch = 8, 2
    input_size, hidden_size, output_size = 16, 32, 10

    key = jax.random.PRNGKey(0)
    k_in, k_h, k_p = jax.random.split(key, 3)

    params = init_params(k_p, input_size, hidden_size, output_size)
    prep = prepare_params(params)          # one-time weight re-layout / bf16 cast

    # small module-consistent shapes (single batch tile)
    inp = jax.random.normal(k_in, (seq_len, batch, input_size), jnp.float32)
    hidden = jax.random.normal(k_h, (1, batch, hidden_size), jnp.float32)
    _check(prep, params, inp, hidden, batch, seq_len, hidden_size)

    # exercise multi-tile batch (grid=2, both v7x cores) + padded partial tile
    big_batch = 160
    k_in2, k_h2 = jax.random.split(jax.random.PRNGKey(1), 2)
    inp2 = jax.random.normal(k_in2, (seq_len, big_batch, input_size), jnp.float32)
    hidden2 = jax.random.normal(k_h2, (1, big_batch, hidden_size), jnp.float32)
    _check(prep, params, inp2, hidden2, big_batch, seq_len, hidden_size)

    print("KERNEL_OK")
</pallas_src>

<mosaic_0001>
module attributes {stable_mosaic.version = 11 : i64} {
  func.func @_attn_gru_kernel(%arg0: i32, %arg1: memref<8x8x128xf32, #tpu.memory_space<vmem>>, %arg2: memref<8x128xf32, #tpu.memory_space<vmem>>, %arg3: memref<256x128xbf16, #tpu.memory_space<vmem>>, %arg4: memref<128x384xbf16, #tpu.memory_space<vmem>>, %arg5: memref<128x384xbf16, #tpu.memory_space<vmem>>, %arg6: memref<3x384xf32, #tpu.memory_space<vmem>>, %arg7: memref<8x128xf32, #tpu.memory_space<vmem>>, %arg8: memref<8x8xf32, #tpu.memory_space<vmem>>) attributes {dimension_semantics = [#tpu.dimension_semantics<parallel>], iteration_bounds = array<i64: 1>, scalar_prefetch = 0 : i64, scratch_operands = 0 : i64, tpu.core_type = #tpu.core_type<tc>, window_params = [{transform_indices = @transform_0, window_bounds = array<i64: 8, 8, 128>}, {transform_indices = @transform_1, window_bounds = array<i64: 8, 128>}, {pipeline_mode = #tpu.pipeline_mode<synchronous>, transform_indices = @transform_2, window_bounds = array<i64: 256, 128>}, {pipeline_mode = #tpu.pipeline_mode<synchronous>, transform_indices = @transform_3, window_bounds = array<i64: 128, 384>}, {pipeline_mode = #tpu.pipeline_mode<synchronous>, transform_indices = @transform_4, window_bounds = array<i64: 128, 384>}, {pipeline_mode = #tpu.pipeline_mode<synchronous>, transform_indices = @transform_5, window_bounds = array<i64: 3, 384>}, {transform_indices = @transform_6, window_bounds = array<i64: 8, 128>}, {transform_indices = @transform_7, window_bounds = array<i64: 8, 8>}]} {
    %c0 = arith.constant 0 : index
    %c0_0 = arith.constant 0 : index
    %0 = vector.load %arg2[%c0, %c0_0] : memref<8x128xf32, #tpu.memory_space<vmem>>, vector<8x128xf32>
    %1 = tpu.iota {dimensions = array<i32: 1>} : vector<8x8xi32>
    %cst = arith.constant 0.000000e+00 : f32
    %2 = vector.broadcast %cst : f32 to vector<8x8xf32>
    %c0_i32 = arith.constant 0 : i32
    %3 = arith.index_cast %c0_i32 : i32 to index
    %c0_1 = arith.constant 0 : index
    %c0_2 = arith.constant 0 : index
    %4 = vector.load %arg1[%3, %c0_1, %c0_2] : memref<8x8x128xf32, #tpu.memory_space<vmem>>, vector<1x8x128xf32>
    %5 = vector.shape_cast %4 : vector<1x8x128xf32> to vector<8x128xf32>
    %6 = arith.mulf %5, %0 : vector<8x128xf32>
    %cst_3 = arith.constant dense<0.000000e+00> : vector<8xf32>
    %7 = vector.multi_reduction <add>, %6, %cst_3 [1] : vector<8x128xf32> to vector<8xf32>
    %8 = vector.shape_cast %7 : vector<8xf32> to vector<8x1xf32>
    %9 = vector.broadcast %c0_i32 : i32 to vector<8x8xi32>
    %10 = arith.cmpi eq, %1, %9 : vector<8x8xi32>
    %11 = vector.shape_cast %8 : vector<8x1xf32> to vector<8x1xf32>
    %12 = vector.broadcast %11 : vector<8x1xf32> to vector<8x8xf32>
    %13 = arith.select %10, %12, %2 : vector<8x8xi1>, vector<8x8xf32>
    %c1_i32 = arith.constant 1 : i32
    %14 = arith.index_cast %c1_i32 : i32 to index
    %c0_4 = arith.constant 0 : index
    %c0_5 = arith.constant 0 : index
    %15 = vector.load %arg1[%14, %c0_4, %c0_5] : memref<8x8x128xf32, #tpu.memory_space<vmem>>, vector<1x8x128xf32>
    %16 = vector.shape_cast %15 : vector<1x8x128xf32> to vector<8x128xf32>
    %17 = arith.mulf %16, %0 : vector<8x128xf32>
    %cst_6 = arith.constant dense<0.000000e+00> : vector<8xf32>
    %18 = vector.multi_reduction <add>, %17, %cst_6 [1] : vector<8x128xf32> to vector<8xf32>
    %19 = vector.shape_cast %18 : vector<8xf32> to vector<8x1xf32>
    %20 = vector.broadcast %c1_i32 : i32 to vector<8x8xi32>
    %21 = arith.cmpi eq, %1, %20 : vector<8x8xi32>
    %22 = vector.shape_cast %19 : vector<8x1xf32> to vector<8x1xf32>
    %23 = vector.broadcast %22 : vector<8x1xf32> to vector<8x8xf32>
    %24 = arith.select %21, %23, %13 : vector<8x8xi1>, vector<8x8xf32>
    %c2_i32 = arith.constant 2 : i32
    %25 = arith.index_cast %c2_i32 : i32 to index
    %c0_7 = arith.constant 0 : index
    %c0_8 = arith.constant 0 : index
    %26 = vector.load %arg1[%25, %c0_7, %c0_8] : memref<8x8x128xf32, #tpu.memory_space<vmem>>, vector<1x8x128xf32>
    %27 = vector.shape_cast %26 : vector<1x8x128xf32> to vector<8x128xf32>
    %28 = arith.mulf %27, %0 : vector<8x128xf32>
    %cst_9 = arith.constant dense<0.000000e+00> : vector<8xf32>
    %29 = vector.multi_reduction <add>, %28, %cst_9 [1] : vector<8x128xf32> to vector<8xf32>
    %30 = vector.shape_cast %29 : vector<8xf32> to vector<8x1xf32>
    %31 = vector.broadcast %c2_i32 : i32 to vector<8x8xi32>
    %32 = arith.cmpi eq, %1, %31 : vector<8x8xi32>
    %33 = vector.shape_cast %30 : vector<8x1xf32> to vector<8x1xf32>
    %34 = vector.broadcast %33 : vector<8x1xf32> to vector<8x8xf32>
    %35 = arith.select %32, %34, %24 : vector<8x8xi1>, vector<8x8xf32>
    %c3_i32 = arith.constant 3 : i32
    %36 = arith.index_cast %c3_i32 : i32 to index
    %c0_10 = arith.constant 0 : index
    %c0_11 = arith.constant 0 : index
    %37 = vector.load %arg1[%36, %c0_10, %c0_11] : memref<8x8x128xf32, #tpu.memory_space<vmem>>, vector<1x8x128xf32>
    %38 = vector.shape_cast %37 : vector<1x8x128xf32> to vector<8x128xf32>
    %39 = arith.mulf %38, %0 : vector<8x128xf32>
    %cst_12 = arith.constant dense<0.000000e+00> : vector<8xf32>
    %40 = vector.multi_reduction <add>, %39, %cst_12 [1] : vector<8x128xf32> to vector<8xf32>
    %41 = vector.shape_cast %40 : vector<8xf32> to vector<8x1xf32>
    %42 = vector.broadcast %c3_i32 : i32 to vector<8x8xi32>
    %43 = arith.cmpi eq, %1, %42 : vector<8x8xi32>
    %44 = vector.shape_cast %41 : vector<8x1xf32> to vector<8x1xf32>
    %45 = vector.broadcast %44 : vector<8x1xf32> to vector<8x8xf32>
    %46 = arith.select %43, %45, %35 : vector<8x8xi1>, vector<8x8xf32>
    %c4_i32 = arith.constant 4 : i32
    %47 = arith.index_cast %c4_i32 : i32 to index
    %c0_13 = arith.constant 0 : index
    %c0_14 = arith.constant 0 : index
    %48 = vector.load %arg1[%47, %c0_13, %c0_14] : memref<8x8x128xf32, #tpu.memory_space<vmem>>, vector<1x8x128xf32>
    %49 = vector.shape_cast %48 : vector<1x8x128xf32> to vector<8x128xf32>
    %50 = arith.mulf %49, %0 : vector<8x128xf32>
    %cst_15 = arith.constant dense<0.000000e+00> : vector<8xf32>
    %51 = vector.multi_reduction <add>, %50, %cst_15 [1] : vector<8x128xf32> to vector<8xf32>
    %52 = vector.shape_cast %51 : vector<8xf32> to vector<8x1xf32>
    %53 = vector.broadcast %c4_i32 : i32 to vector<8x8xi32>
    %54 = arith.cmpi eq, %1, %53 : vector<8x8xi32>
    %55 = vector.shape_cast %52 : vector<8x1xf32> to vector<8x1xf32>
    %56 = vector.broadcast %55 : vector<8x1xf32> to vector<8x8xf32>
    %57 = arith.select %54, %56, %46 : vector<8x8xi1>, vector<8x8xf32>
    %c5_i32 = arith.constant 5 : i32
    %58 = arith.index_cast %c5_i32 : i32 to index
    %c0_16 = arith.constant 0 : index
    %c0_17 = arith.constant 0 : index
    %59 = vector.load %arg1[%58, %c0_16, %c0_17] : memref<8x8x128xf32, #tpu.memory_space<vmem>>, vector<1x8x128xf32>
    %60 = vector.shape_cast %59 : vector<1x8x128xf32> to vector<8x128xf32>
    %61 = arith.mulf %60, %0 : vector<8x128xf32>
    %cst_18 = arith.constant dense<0.000000e+00> : vector<8xf32>
    %62 = vector.multi_reduction <add>, %61, %cst_18 [1] : vector<8x128xf32> to vector<8xf32>
    %63 = vector.shape_cast %62 : vector<8xf32> to vector<8x1xf32>
    %64 = vector.broadcast %c5_i32 : i32 to vector<8x8xi32>
    %65 = arith.cmpi eq, %1, %64 : vector<8x8xi32>
    %66 = vector.shape_cast %63 : vector<8x1xf32> to vector<8x1xf32>
    %67 = vector.broadcast %66 : vector<8x1xf32> to vector<8x8xf32>
    %68 = arith.select %65, %67, %57 : vector<8x8xi1>, vector<8x8xf32>
    %c6_i32 = arith.constant 6 : i32
    %69 = arith.index_cast %c6_i32 : i32 to index
    %c0_19 = arith.constant 0 : index
    %c0_20 = arith.constant 0 : index
    %70 = vector.load %arg1[%69, %c0_19, %c0_20] : memref<8x8x128xf32, #tpu.memory_space<vmem>>, vector<1x8x128xf32>
    %71 = vector.shape_cast %70 : vector<1x8x128xf32> to vector<8x128xf32>
    %72 = arith.mulf %71, %0 : vector<8x128xf32>
    %cst_21 = arith.constant dense<0.000000e+00> : vector<8xf32>
    %73 = vector.multi_reduction <add>, %72, %cst_21 [1] : vector<8x128xf32> to vector<8xf32>
    %74 = vector.shape_cast %73 : vector<8xf32> to vector<8x1xf32>
    %75 = vector.broadcast %c6_i32 : i32 to vector<8x8xi32>
    %76 = arith.cmpi eq, %1, %75 : vector<8x8xi32>
    %77 = vector.shape_cast %74 : vector<8x1xf32> to vector<8x1xf32>
    %78 = vector.broadcast %77 : vector<8x1xf32> to vector<8x8xf32>
    %79 = arith.select %76, %78, %68 : vector<8x8xi1>, vector<8x8xf32>
    %c7_i32 = arith.constant 7 : i32
    %80 = arith.index_cast %c7_i32 : i32 to index
    %c0_22 = arith.constant 0 : index
    %c0_23 = arith.constant 0 : index
    %81 = vector.load %arg1[%80, %c0_22, %c0_23] : memref<8x8x128xf32, #tpu.memory_space<vmem>>, vector<1x8x128xf32>
    %82 = vector.shape_cast %81 : vector<1x8x128xf32> to vector<8x128xf32>
    %83 = arith.mulf %82, %0 : vector<8x128xf32>
    %cst_24 = arith.constant dense<0.000000e+00> : vector<8xf32>
    %84 = vector.multi_reduction <add>, %83, %cst_24 [1] : vector<8x128xf32> to vector<8xf32>
    %85 = vector.shape_cast %84 : vector<8xf32> to vector<8x1xf32>
    %86 = vector.broadcast %c7_i32 : i32 to vector<8x8xi32>
    %87 = arith.cmpi eq, %1, %86 : vector<8x8xi32>
    %88 = vector.shape_cast %85 : vector<8x1xf32> to vector<8x1xf32>
    %89 = vector.broadcast %88 : vector<8x1xf32> to vector<8x8xf32>
    %90 = arith.select %87, %89, %79 : vector<8x8xi1>, vector<8x8xf32>
    %c8_i32 = arith.constant 8 : i32
    %cst_25 = arith.constant dense<0xFF800000> : vector<8xf32>
    %91 = vector.multi_reduction <maximumf>, %90, %cst_25 [1] : vector<8x8xf32> to vector<8xf32>
    %92 = vector.shape_cast %91 : vector<8xf32> to vector<8x1xf32>
    %93 = vector.broadcast %92 : vector<8x1xf32> to vector<8x8xf32>
    %94 = arith.subf %90, %93 : vector<8x8xf32>
    %95 = math.exp %94 : vector<8x8xf32>
    %cst_26 = arith.constant dense<0.000000e+00> : vector<8xf32>
    %96 = vector.multi_reduction <add>, %95, %cst_26 [1] : vector<8x8xf32> to vector<8xf32>
    %97 = vector.shape_cast %96 : vector<8xf32> to vector<8x1xf32>
    %98 = tpu.reciprocal %97 {approx = true} : vector<8x1xf32> -> vector<8x1xf32>
    %99 = vector.broadcast %98 : vector<8x1xf32> to vector<8x8xf32>
    %100 = arith.mulf %95, %99 : vector<8x8xf32>
    %c0_27 = arith.constant 0 : index
    %c0_28 = arith.constant 0 : index
    %101 = vector.load %arg8[%c0_27, %c0_28] : memref<8x8xf32, #tpu.memory_space<vmem>>, vector<8x8xf32>
    tpu.vector_store %arg8[%c0_27, %c0_28], %100 {strides = array<i32>} : memref<8x8xf32, #tpu.memory_space<vmem>>, vector<8x8xf32>,
    %cst_29 = arith.constant 0.000000e+00 : f32
    %102 = vector.broadcast %cst_29 : f32 to vector<8x128xf32>
    %c0_i32_30 = arith.constant 0 : i32
    %103 = arith.index_cast %c0_i32_30 : i32 to index
    %c0_31 = arith.constant 0 : index
    %c0_32 = arith.constant 0 : index
    %104 = vector.load %arg1[%103, %c0_31, %c0_32] : memref<8x8x128xf32, #tpu.memory_space<vmem>>, vector<1x8x128xf32>
    %105 = vector.shape_cast %104 : vector<1x8x128xf32> to vector<8x128xf32>
    %106 = vector.broadcast %c0_i32_30 : i32 to vector<8x8xi32>
    %107 = arith.cmpi eq, %1, %106 : vector<8x8xi32>
    %cst_33 = arith.constant 0.000000e+00 : f32
    %108 = vector.broadcast %cst_33 : f32 to vector<8x8xf32>
    %109 = arith.select %107, %100, %108 : vector<8x8xi1>, vector<8x8xf32>
    %cst_34 = arith.constant dense<0.000000e+00> : vector<8xf32>
    %110 = vector.multi_reduction <add>, %109, %cst_34 [1] : vector<8x8xf32> to vector<8xf32>
    %111 = vector.shape_cast %110 : vector<8xf32> to vector<8x1xf32>
    %112 = vector.broadcast %111 : vector<8x1xf32> to vector<8x128xf32>
    %113 = arith.mulf %112, %105 : vector<8x128xf32>
    %114 = arith.addf %102, %113 : vector<8x128xf32>
    %c1_i32_35 = arith.constant 1 : i32
    %115 = arith.index_cast %c1_i32_35 : i32 to index
    %c0_36 = arith.constant 0 : index
    %c0_37 = arith.constant 0 : index
    %116 = vector.load %arg1[%115, %c0_36, %c0_37] : memref<8x8x128xf32, #tpu.memory_space<vmem>>, vector<1x8x128xf32>
    %117 = vector.shape_cast %116 : vector<1x8x128xf32> to vector<8x128xf32>
    %118 = vector.broadcast %c1_i32_35 : i32 to vector<8x8xi32>
    %119 = arith.cmpi eq, %1, %118 : vector<8x8xi32>
    %cst_38 = arith.constant 0.000000e+00 : f32
    %120 = vector.broadcast %cst_38 : f32 to vector<8x8xf32>
    %121 = arith.select %119, %100, %120 : vector<8x8xi1>, vector<8x8xf32>
    %cst_39 = arith.constant dense<0.000000e+00> : vector<8xf32>
    %122 = vector.multi_reduction <add>, %121, %cst_39 [1] : vector<8x8xf32> to vector<8xf32>
    %123 = vector.shape_cast %122 : vector<8xf32> to vector<8x1xf32>
    %124 = vector.broadcast %123 : vector<8x1xf32> to vector<8x128xf32>
    %125 = arith.mulf %124, %117 : vector<8x128xf32>
    %126 = arith.addf %114, %125 : vector<8x128xf32>
    %c2_i32_40 = arith.constant 2 : i32
    %127 = arith.index_cast %c2_i32_40 : i32 to index
    %c0_41 = arith.constant 0 : index
    %c0_42 = arith.constant 0 : index
    %128 = vector.load %arg1[%127, %c0_41, %c0_42] : memref<8x8x128xf32, #tpu.memory_space<vmem>>, vector<1x8x128xf32>
    %129 = vector.shape_cast %128 : vector<1x8x128xf32> to vector<8x128xf32>
    %130 = vector.broadcast %c2_i32_40 : i32 to vector<8x8xi32>
    %131 = arith.cmpi eq, %1, %130 : vector<8x8xi32>
    %cst_43 = arith.constant 0.000000e+00 : f32
    %132 = vector.broadcast %cst_43 : f32 to vector<8x8xf32>
    %133 = arith.select %131, %100, %132 : vector<8x8xi1>, vector<8x8xf32>
    %cst_44 = arith.constant dense<0.000000e+00> : vector<8xf32>
    %134 = vector.multi_reduction <add>, %133, %cst_44 [1] : vector<8x8xf32> to vector<8xf32>
    %135 = vector.shape_cast %134 : vector<8xf32> to vector<8x1xf32>
    %136 = vector.broadcast %135 : vector<8x1xf32> to vector<8x128xf32>
    %137 = arith.mulf %136, %129 : vector<8x128xf32>
    %138 = arith.addf %126, %137 : vector<8x128xf32>
    %c3_i32_45 = arith.constant 3 : i32
    %139 = arith.index_cast %c3_i32_45 : i32 to index
    %c0_46 = arith.constant 0 : index
    %c0_47 = arith.constant 0 : index
    %140 = vector.load %arg1[%139, %c0_46, %c0_47] : memref<8x8x128xf32, #tpu.memory_space<vmem>>, vector<1x8x128xf32>
    %141 = vector.shape_cast %140 : vector<1x8x128xf32> to vector<8x128xf32>
    %142 = vector.broadcast %c3_i32_45 : i32 to vector<8x8xi32>
    %143 = arith.cmpi eq, %1, %142 : vector<8x8xi32>
    %cst_48 = arith.constant 0.000000e+00 : f32
    %144 = vector.broadcast %cst_48 : f32 to vector<8x8xf32>
    %145 = arith.select %143, %100, %144 : vector<8x8xi1>, vector<8x8xf32>
    %cst_49 = arith.constant dense<0.000000e+00> : vector<8xf32>
    %146 = vector.multi_reduction <add>, %145, %cst_49 [1] : vector<8x8xf32> to vector<8xf32>
    %147 = vector.shape_cast %146 : vector<8xf32> to vector<8x1xf32>
    %148 = vector.broadcast %147 : vector<8x1xf32> to vector<8x128xf32>
    %149 = arith.mulf %148, %141 : vector<8x128xf32>
    %150 = arith.addf %138, %149 : vector<8x128xf32>
    %c4_i32_50 = arith.constant 4 : i32
    %151 = arith.index_cast %c4_i32_50 : i32 to index
    %c0_51 = arith.constant 0 : index
    %c0_52 = arith.constant 0 : index
    %152 = vector.load %arg1[%151, %c0_51, %c0_52] : memref<8x8x128xf32, #tpu.memory_space<vmem>>, vector<1x8x128xf32>
    %153 = vector.shape_cast %152 : vector<1x8x128xf32> to vector<8x128xf32>
    %154 = vector.broadcast %c4_i32_50 : i32 to vector<8x8xi32>
    %155 = arith.cmpi eq, %1, %154 : vector<8x8xi32>
    %cst_53 = arith.constant 0.000000e+00 : f32
    %156 = vector.broadcast %cst_53 : f32 to vector<8x8xf32>
    %157 = arith.select %155, %100, %156 : vector<8x8xi1>, vector<8x8xf32>
    %cst_54 = arith.constant dense<0.000000e+00> : vector<8xf32>
    %158 = vector.multi_reduction <add>, %157, %cst_54 [1] : vector<8x8xf32> to vector<8xf32>
    %159 = vector.shape_cast %158 : vector<8xf32> to vector<8x1xf32>
    %160 = vector.broadcast %159 : vector<8x1xf32> to vector<8x128xf32>
    %161 = arith.mulf %160, %153 : vector<8x128xf32>
    %162 = arith.addf %150, %161 : vector<8x128xf32>
    %c5_i32_55 = arith.constant 5 : i32
    %163 = arith.index_cast %c5_i32_55 : i32 to index
    %c0_56 = arith.constant 0 : index
    %c0_57 = arith.constant 0 : index
    %164 = vector.load %arg1[%163, %c0_56, %c0_57] : memref<8x8x128xf32, #tpu.memory_space<vmem>>, vector<1x8x128xf32>
    %165 = vector.shape_cast %164 : vector<1x8x128xf32> to vector<8x128xf32>
    %166 = vector.broadcast %c5_i32_55 : i32 to vector<8x8xi32>
    %167 = arith.cmpi eq, %1, %166 : vector<8x8xi32>
    %cst_58 = arith.constant 0.000000e+00 : f32
    %168 = vector.broadcast %cst_58 : f32 to vector<8x8xf32>
    %169 = arith.select %167, %100, %168 : vector<8x8xi1>, vector<8x8xf32>
    %cst_59 = arith.constant dense<0.000000e+00> : vector<8xf32>
    %170 = vector.multi_reduction <add>, %169, %cst_59 [1] : vector<8x8xf32> to vector<8xf32>
    %171 = vector.shape_cast %170 : vector<8xf32> to vector<8x1xf32>
    %172 = vector.broadcast %171 : vector<8x1xf32> to vector<8x128xf32>
    %173 = arith.mulf %172, %165 : vector<8x128xf32>
    %174 = arith.addf %162, %173 : vector<8x128xf32>
    %c6_i32_60 = arith.constant 6 : i32
    %175 = arith.index_cast %c6_i32_60 : i32 to index
    %c0_61 = arith.constant 0 : index
    %c0_62 = arith.constant 0 : index
    %176 = vector.load %arg1[%175, %c0_61, %c0_62] : memref<8x8x128xf32, #tpu.memory_space<vmem>>, vector<1x8x128xf32>
    %177 = vector.shape_cast %176 : vector<1x8x128xf32> to vector<8x128xf32>
    %178 = vector.broadcast %c6_i32_60 : i32 to vector<8x8xi32>
    %179 = arith.cmpi eq, %1, %178 : vector<8x8xi32>
    %cst_63 = arith.constant 0.000000e+00 : f32
    %180 = vector.broadcast %cst_63 : f32 to vector<8x8xf32>
    %181 = arith.select %179, %100, %180 : vector<8x8xi1>, vector<8x8xf32>
    %cst_64 = arith.constant dense<0.000000e+00> : vector<8xf32>
    %182 = vector.multi_reduction <add>, %181, %cst_64 [1] : vector<8x8xf32> to vector<8xf32>
    %183 = vector.shape_cast %182 : vector<8xf32> to vector<8x1xf32>
    %184 = vector.broadcast %183 : vector<8x1xf32> to vector<8x128xf32>
    %185 = arith.mulf %184, %177 : vector<8x128xf32>
    %186 = arith.addf %174, %185 : vector<8x128xf32>
    %c7_i32_65 = arith.constant 7 : i32
    %187 = arith.index_cast %c7_i32_65 : i32 to index
    %c0_66 = arith.constant 0 : index
    %c0_67 = arith.constant 0 : index
    %188 = vector.load %arg1[%187, %c0_66, %c0_67] : memref<8x8x128xf32, #tpu.memory_space<vmem>>, vector<1x8x128xf32>
    %189 = vector.shape_cast %188 : vector<1x8x128xf32> to vector<8x128xf32>
    %190 = vector.broadcast %c7_i32_65 : i32 to vector<8x8xi32>
    %191 = arith.cmpi eq, %1, %190 : vector<8x8xi32>
    %cst_68 = arith.constant 0.000000e+00 : f32
    %192 = vector.broadcast %cst_68 : f32 to vector<8x8xf32>
    %193 = arith.select %191, %100, %192 : vector<8x8xi1>, vector<8x8xf32>
    %cst_69 = arith.constant dense<0.000000e+00> : vector<8xf32>
    %194 = vector.multi_reduction <add>, %193, %cst_69 [1] : vector<8x8xf32> to vector<8xf32>
    %195 = vector.shape_cast %194 : vector<8xf32> to vector<8x1xf32>
    %196 = vector.broadcast %195 : vector<8x1xf32> to vector<8x128xf32>
    %197 = arith.mulf %196, %189 : vector<8x128xf32>
    %198 = arith.addf %186, %197 : vector<8x128xf32>
    %c8_i32_70 = arith.constant 8 : i32
    %199 = tpu.concatenate %198, %0 in 1 : vector<8x128xf32>, vector<8x128xf32> -> vector<8x256xf32>
    %200 = arith.truncf %199 : vector<8x256xf32> to vector<8x256xbf16>
    %c0_71 = arith.constant 0 : index
    %c0_72 = arith.constant 0 : index
    %201 = vector.load %arg6[%c0_71, %c0_72] : memref<3x384xf32, #tpu.memory_space<vmem>>, vector<1x128xf32>
    %c0_73 = arith.constant 0 : index
    %c0_74 = arith.constant 0 : index
    %202 = vector.load %arg3[%c0_73, %c0_74] : memref<256x128xbf16, #tpu.memory_space<vmem>>, vector<256x128xbf16>
    %cst_75 = arith.constant dense<0.000000e+00> : vector<8x128xf32>
    %203 = tpu.matmul %200, %202, %cst_75 {dimension_numbers = #tpu.dot_dimension_numbers<[1], [0], [0], [1], [0, 0, 1, 1], [], []>} : vector<8x256xbf16>, vector<256x128xbf16>, vector<8x128xf32> -> vector<8x128xf32>
    %204 = vector.broadcast %201 : vector<1x128xf32> to vector<8x128xf32>
    %205 = arith.addf %203, %204 : vector<8x128xf32>
    %206 = math.tanh %205 : vector<8x128xf32>
    %207 = arith.truncf %206 : vector<8x128xf32> to vector<8x128xbf16>
    %c0_76 = arith.constant 0 : index
    %c0_77 = arith.constant 0 : index
    %208 = vector.load %arg4[%c0_76, %c0_77] : memref<128x384xbf16, #tpu.memory_space<vmem>>, vector<128x384xbf16>
    %cst_78 = arith.constant dense<0.000000e+00> : vector<8x384xf32>
    %209 = tpu.matmul %207, %208, %cst_78 {dimension_numbers = #tpu.dot_dimension_numbers<[1], [0], [0], [1], [0, 0, 1, 1], [], []>} : vector<8x128xbf16>, vector<128x384xbf16>, vector<8x384xf32> -> vector<8x384xf32>
    %c1 = arith.constant 1 : index
    %c0_79 = arith.constant 0 : index
    %210 = vector.load %arg6[%c1, %c0_79] : memref<3x384xf32, #tpu.memory_space<vmem>>, vector<1x384xf32>
    %211 = vector.broadcast %210 : vector<1x384xf32> to vector<8x384xf32>
    %212 = arith.addf %209, %211 : vector<8x384xf32>
    %213 = arith.truncf %0 : vector<8x128xf32> to vector<8x128xbf16>
    %c0_80 = arith.constant 0 : index
    %c0_81 = arith.constant 0 : index
    %214 = vector.load %arg5[%c0_80, %c0_81] : memref<128x384xbf16, #tpu.memory_space<vmem>>, vector<128x384xbf16>
    %cst_82 = arith.constant dense<0.000000e+00> : vector<8x384xf32>
    %215 = tpu.matmul %213, %214, %cst_82 {dimension_numbers = #tpu.dot_dimension_numbers<[1], [0], [0], [1], [0, 0, 1, 1], [], []>} : vector<8x128xbf16>, vector<128x384xbf16>, vector<8x384xf32> -> vector<8x384xf32>
    %c2 = arith.constant 2 : index
    %c0_83 = arith.constant 0 : index
    %216 = vector.load %arg6[%c2, %c0_83] : memref<3x384xf32, #tpu.memory_space<vmem>>, vector<1x384xf32>
    %217 = vector.broadcast %216 : vector<1x384xf32> to vector<8x384xf32>
    %218 = arith.addf %215, %217 : vector<8x384xf32>
    %219 = vector.extract_strided_slice %212 {offsets = [0, 0], sizes = [8, 128], strides = [1, 1]} : vector<8x384xf32> to vector<8x128xf32>
    %220 = vector.extract_strided_slice %218 {offsets = [0, 0], sizes = [8, 128], strides = [1, 1]} : vector<8x384xf32> to vector<8x128xf32>
    %221 = arith.addf %219, %220 : vector<8x128xf32>
    %222 = arith.negf %221 : vector<8x128xf32>
    %223 = math.exp %222 : vector<8x128xf32>
    %cst_84 = arith.constant 1.000000e+00 : f32
    %224 = vector.broadcast %cst_84 : f32 to vector<8x128xf32>
    %225 = arith.addf %224, %223 : vector<8x128xf32>
    %226 = arith.divf %224, %225 : vector<8x128xf32>
    %227 = vector.extract_strided_slice %212 {offsets = [0, 128], sizes = [8, 128], strides = [1, 1]} : vector<8x384xf32> to vector<8x128xf32>
    %228 = vector.extract_strided_slice %218 {offsets = [0, 128], sizes = [8, 128], strides = [1, 1]} : vector<8x384xf32> to vector<8x128xf32>
    %229 = arith.addf %227, %228 : vector<8x128xf32>
    %230 = arith.negf %229 : vector<8x128xf32>
    %231 = math.exp %230 : vector<8x128xf32>
    %cst_85 = arith.constant 1.000000e+00 : f32
    %232 = vector.broadcast %cst_85 : f32 to vector<8x128xf32>
    %233 = arith.addf %232, %231 : vector<8x128xf32>
    %234 = arith.divf %232, %233 : vector<8x128xf32>
    %235 = vector.extract_strided_slice %212 {offsets = [0, 256], sizes = [8, 128], strides = [1, 1]} : vector<8x384xf32> to vector<8x128xf32>
    %236 = vector.extract_strided_slice %218 {offsets = [0, 256], sizes = [8, 128], strides = [1, 1]} : vector<8x384xf32> to vector<8x128xf32>
    %237 = arith.mulf %226, %236 : vector<8x128xf32>
    %238 = arith.addf %235, %237 : vector<8x128xf32>
    %239 = math.tanh %238 : vector<8x128xf32>
    %cst_86 = arith.constant 1.000000e+00 : f32
    %240 = vector.broadcast %cst_86 : f32 to vector<8x128xf32>
    %241 = arith.subf %240, %234 : vector<8x128xf32>
    %242 = arith.mulf %241, %239 : vector<8x128xf32>
    %243 = arith.mulf %234, %0 : vector<8x128xf32>
    %244 = arith.addf %242, %243 : vector<8x128xf32>
    %c0_87 = arith.constant 0 : index
    %c0_88 = arith.constant 0 : index
    %245 = vector.load %arg7[%c0_87, %c0_88] : memref<8x128xf32, #tpu.memory_space<vmem>>, vector<8x128xf32>
    tpu.vector_store %arg7[%c0_87, %c0_88], %244 {strides = array<i32>} : memref<8x128xf32, #tpu.memory_space<vmem>>, vector<8x128xf32>,
    return
  }
  func.func @transform_0(%arg0: i32) -> (i32, i32, i32) {
    %c0_i32 = arith.constant 0 : i32
    %c0_i32_0 = arith.constant 0 : i32
    %c0_i32_1 = arith.constant 0 : i32
    return %c0_i32, %arg0, %c0_i32_0 : i32, i32, i32
  }
  func.func @transform_1(%arg0: i32) -> (i32, i32) {
    %c0_i32 = arith.constant 0 : i32
    %c0_i32_0 = arith.constant 0 : i32
    return %arg0, %c0_i32 : i32, i32
  }
  func.func @transform_2(%arg0: i32) -> (i32, i32) {
    %c0_i32 = arith.constant 0 : i32
    %c0_i32_0 = arith.constant 0 : i32
    %c0_i32_1 = arith.constant 0 : i32
    return %c0_i32, %c0_i32_0 : i32, i32
  }
  func.func @transform_3(%arg0: i32) -> (i32, i32) {
    %c0_i32 = arith.constant 0 : i32
    %c0_i32_0 = arith.constant 0 : i32
    %c0_i32_1 = arith.constant 0 : i32
    return %c0_i32, %c0_i32_0 : i32, i32
  }
  func.func @transform_4(%arg0: i32) -> (i32, i32) {
    %c0_i32 = arith.constant 0 : i32
    %c0_i32_0 = arith.constant 0 : i32
    %c0_i32_1 = arith.constant 0 : i32
    return %c0_i32, %c0_i32_0 : i32, i32
  }
  func.func @transform_5(%arg0: i32) -> (i32, i32) {
    %c0_i32 = arith.constant 0 : i32
    %c0_i32_0 = arith.constant 0 : i32
    %c0_i32_1 = arith.constant 0 : i32
    return %c0_i32, %c0_i32_0 : i32, i32
  }
  func.func @transform_6(%arg0: i32) -> (i32, i32) {
    %c0_i32 = arith.constant 0 : i32
    %c0_i32_0 = arith.constant 0 : i32
    return %arg0, %c0_i32 : i32, i32
  }
  func.func @transform_7(%arg0: i32) -> (i32, i32) {
    %c0_i32 = arith.constant 0 : i32
    %c0_i32_0 = arith.constant 0 : i32
    return %arg0, %c0_i32 : i32, i32
  }
}

</mosaic_0001>

<llo_original>
// kernel: tpu_custom_call.1
$region0: #{tpu_custom_call.1}
  #allocation0 [shape = 'u32[]', space=smem, size = 0x4, offset = 0x4, fixed_abs, tag = 'smem constant byte address 0x4 - core index']
  #allocation1 [shape = 'u32[144,128]{1,0:T(1,128)}', space=vmem, size = 0x12000, scoped, tag = 'internal scratch']
  %s0 = inlined_call_operand.hbm [shape: f32[8,8,128], index: 0, kind: input, shape index: {}]
  %s1 = inlined_call_operand.hbm [shape: f32[8,128], index: 1, kind: input, shape index: {}]
  %s2 = inlined_call_operand.hbm [shape: bf16[256,128], index: 2, kind: input, shape index: {}]
  %s3 = inlined_call_operand.hbm [shape: bf16[128,384], index: 3, kind: input, shape index: {}]
  %s4 = inlined_call_operand.hbm [shape: bf16[128,384], index: 4, kind: input, shape index: {}]
  %s5 = inlined_call_operand.hbm [shape: f32[3,384], index: 5, kind: input, shape index: {}]
  %s6 = inlined_call_operand.hbm [shape: f32[8,128], index: 6, kind: output, shape index: {0}]
  %s7 = inlined_call_operand.hbm [shape: f32[8,8], index: 7, kind: output, shape index: {1}]
  %8 = xla_tuple %s6, %s7
  %s9 = sld [smem:[#allocation0]]
  $region66: #{tpu_custom_call.1} parent=0
    _
  %s11 = ssub.s32 1, %s9
  %s12 = scalar_select 0, %s11, %s9
  $region1: #{tpu_custom_call.1} parent=0
    #allocation2 [shape = 'u8[32768]{0}', space=vmem, size = 0x8000, scoped, tag = 'input window, operand 0, single buffered']
    #allocation3 [shape = 's32[1]{0}', space=sflag, size = 0x4, scoped, tag = 'scoped memory for tpu_custom_call.1']
    #allocation4 [shape = 's32[1]{0}', space=sflag, size = 0x4, scoped, tag = 'scoped memory for tpu_custom_call.1']
    #allocation5 [shape = 'u8[4096]{0}', space=vmem, size = 0x1000, scoped, tag = 'input window, operand 1, single buffered']
    #allocation6 [shape = 's32[1]{0}', space=sflag, size = 0x4, scoped, tag = 'scoped memory for tpu_custom_call.1']
    #allocation7 [shape = 'u8[65536]{0}', space=vmem, size = 0x10000, scoped, tag = 'input window, operand 2, single buffered']
    #allocation8 [shape = 'u8[98304]{0}', space=vmem, size = 0x18000, scoped, tag = 'input window, operand 3, single buffered']
    #allocation9 [shape = 's32[1]{0}', space=sflag, size = 0x4, scoped, tag = 'scoped memory for tpu_custom_call.1']
    #allocation10 [shape = 'u8[98304]{0}', space=vmem, size = 0x18000, scoped, tag = 'input window, operand 4, single buffered']
    #allocation11 [shape = 'u8[6144]{0}', space=vmem, size = 0x1800, scoped, tag = 'input window, operand 5, single buffered']
    #allocation12 [shape = 's32[1]{0}', space=sflag, size = 0x4, scoped, tag = 'scoped memory for tpu_custom_call.1']
    #allocation13 [shape = 'u8[4096]{0}', space=vmem, size = 0x1000, scoped, tag = 'output window, operand 0, single buffered']
    #allocation14 [shape = 'u8[4096]{0}', space=vmem, size = 0x1000, scoped, tag = 'output window, operand 1, single buffered']
    #allocation15 [shape = 's32[1]{0}', space=sflag, size = 0x4, scoped, tag = 'scoped memory for tpu_custom_call.1']
    %13 = vsyncpa [#allocation3], 0
    %14 = vsyncpa [#allocation6], 0
    %15 = vsyncpa [#allocation9], 0
    %16 = vsyncpa [#allocation12], 0
    %17 = vsyncpa [#allocation4], 0
    %18 = vsyncpa [#allocation15], 0
    // Predicated region
    $region2: #{tpu_custom_call.1} parent=1 // pred_check
      _
    $region3: #{tpu_custom_call.1} parent=1 // pred_check_branch
      %20 = sbr.rel (0) target = $region5
    $region4: #{tpu_custom_call.1} parent=1 // pred_region
      %s22 = ssub.s32 1024, 1024
      %23 = vsyncadd [#allocation3], %s22
      %s24 = sshll.u32 [#allocation2], 4
      %s25 = int_to_ptr.vmem [resolvable:$true] %s24
      %30 = dma.hbm_to_vmem [thread:$0]  %s0, 1024, %s25, [#allocation3], 128, 128, 8
    $region5: #{tpu_custom_call.1} parent=1 // pred_fallthru
      _
    // Predicated region
    $region6: #{tpu_custom_call.1} parent=1 // pred_check
      _
    $region7: #{tpu_custom_call.1} parent=1 // pred_check_branch
      %32 = sbr.rel (0) target = $region9
    $region8: #{tpu_custom_call.1} parent=1 // pred_region
      %s34 = ssub.s32 128, 128
      %35 = vsyncadd [#allocation6], %s34
      %s37 = sshll.u32 [#allocation5], 4
      %s38 = int_to_ptr.vmem [resolvable:$true] %s37
      %40 = dma.hbm_to_vmem [thread:$0]  %s1, 128, %s38, [#allocation6]
    $region9: #{tpu_custom_call.1} parent=1 // pred_fallthru
      _
    // Predicated region
    $region10: #{tpu_custom_call.1} parent=1 // pred_check
      _
    $region11: #{tpu_custom_call.1} parent=1 // pred_check_branch
      %42 = sbr.rel (0) target = $region13
    $region12: #{tpu_custom_call.1} parent=1 // pred_region
      %s44 = ssub.s32 2048, 2048
      %45 = vsyncadd [#allocation6], %s44
      %s46 = sshll.u32 [#allocation7], 4
      %s47 = int_to_ptr.vmem [resolvable:$true] %s46
      %52 = dma.hbm_to_vmem [thread:$0]  %s2, 2048, %s47, [#allocation6], 64, 64, 4
    $region13: #{tpu_custom_call.1} parent=1 // pred_fallthru
      _
    // Predicated region
    $region14: #{tpu_custom_call.1} parent=1 // pred_check
      _
    $region15: #{tpu_custom_call.1} parent=1 // pred_check_branch
      %54 = sbr.rel (0) target = $region17
    $region16: #{tpu_custom_call.1} parent=1 // pred_region
      %s56 = ssub.s32 3072, 3072
      %57 = vsyncadd [#allocation9], %s56
      %s58 = sshll.u32 [#allocation8], 4
      %s59 = int_to_ptr.vmem [resolvable:$true] %s58
      %64 = dma.hbm_to_vmem [thread:$0]  %s3, 3072, %s59, [#allocation9], 192, 192, 12
    $region17: #{tpu_custom_call.1} parent=1 // pred_fallthru
      _
    // Predicated region
    $region18: #{tpu_custom_call.1} parent=1 // pred_check
      _
    $region19: #{tpu_custom_call.1} parent=1 // pred_check_branch
      %66 = sbr.rel (0) target = $region21
    $region20: #{tpu_custom_call.1} parent=1 // pred_region
      %s68 = ssub.s32 3072, 3072
      %69 = vsyncadd [#allocation9], %s68
      %s70 = sshll.u32 [#allocation10], 4
      %s71 = int_to_ptr.vmem [resolvable:$true] %s70
      %76 = dma.hbm_to_vmem [thread:$0]  %s4, 3072, %s71, [#allocation9], 192, 192, 12
    $region21: #{tpu_custom_call.1} parent=1 // pred_fallthru
      _
    // Predicated region
    $region22: #{tpu_custom_call.1} parent=1 // pred_check
      _
    $region23: #{tpu_custom_call.1} parent=1 // pred_check_branch
      %78 = sbr.rel (0) target = $region25
    $region24: #{tpu_custom_call.1} parent=1 // pred_region
      %s80 = ssub.s32 192, 192
      %81 = vsyncadd [#allocation12], %s80
      %s83 = sshll.u32 [#allocation11], 4
      %s84 = int_to_ptr.vmem [resolvable:$true] %s83
      %86 = dma.hbm_to_vmem [thread:$0]  %s5, 192, %s84, [#allocation12]
    $region25: #{tpu_custom_call.1} parent=1 // pred_fallthru
      _
    // Predicated region
    $region26: #{tpu_custom_call.1} parent=1 // pred_check
      _
    $region27: #{tpu_custom_call.1} parent=1 // pred_check_branch
      %88 = sbr.rel (0) target = $region29
    $region28: #{tpu_custom_call.1} parent=1 // pred_region
      %89 = dma.done [#allocation3], 1024
    $region29: #{tpu_custom_call.1} parent=1 // pred_fallthru
      _
    // Predicated region
    $region30: #{tpu_custom_call.1} parent=1 // pred_check
      _
    $region31: #{tpu_custom_call.1} parent=1 // pred_check_branch
      %91 = sbr.rel (0) target = $region33
    $region32: #{tpu_custom_call.1} parent=1 // pred_region
      %92 = dma.done [#allocation6], 128
    $region33: #{tpu_custom_call.1} parent=1 // pred_fallthru
      _
    // Predicated region
    $region34: #{tpu_custom_call.1} parent=1 // pred_check
      _
    $region35: #{tpu_custom_call.1} parent=1 // pred_check_branch
      %94 = sbr.rel (0) target = $region37
    $region36: #{tpu_custom_call.1} parent=1 // pred_region
      %95 = dma.done [#allocation6], 2048
    $region37: #{tpu_custom_call.1} parent=1 // pred_fallthru
      _
    // Predicated region
    $region38: #{tpu_custom_call.1} parent=1 // pred_check
      _
    $region39: #{tpu_custom_call.1} parent=1 // pred_check_branch
      %97 = sbr.rel (0) target = $region41
    $region40: #{tpu_custom_call.1} parent=1 // pred_region
      %98 = dma.done [#allocation9], 3072
    $region41: #{tpu_custom_call.1} parent=1 // pred_fallthru
      _
    // Predicated region
    $region42: #{tpu_custom_call.1} parent=1 // pred_check
      _
    $region43: #{tpu_custom_call.1} parent=1 // pred_check_branch
      %100 = sbr.rel (0) target = $region45
    $region44: #{tpu_custom_call.1} parent=1 // pred_region
      %101 = dma.done [#allocation9], 3072
    $region45: #{tpu_custom_call.1} parent=1 // pred_fallthru
      _
    // Predicated region
    $region46: #{tpu_custom_call.1} parent=1 // pred_check
      _
    $region47: #{tpu_custom_call.1} parent=1 // pred_check_branch
      %103 = sbr.rel (0) target = $region49
    $region48: #{tpu_custom_call.1} parent=1 // pred_region
      %104 = dma.done [#allocation12], 192
    $region49: #{tpu_custom_call.1} parent=1 // pred_fallthru
      _
    %v106 = vld [vmem:[#allocation5] sm:$0xff]
    %v107 = vlaneseq
    %v108 = vand.u32 %v107, 127
    %v109 = vld [vmem:[#allocation2] sm:$0xff]
    %v110 = vmul.f32 %v109, %v106
    %111 = vadd.xlane.f32.xlu0 %v110
    %v112 = vpop.xlane.xlu0 %111
    %vm113 = vcmp.eq.s32.totalorder %v108, 0
    %v114 = vsel %vm113, %v112, 0.0
    %s115 = scalar_lea.vmem [#allocation2], 8
    %v116 = vld [vmem:[%s115] sm:$0xff]
    %v117 = vmul.f32 %v116, %v106
    %118 = vadd.xlane.f32.xlu0 %v117
    %v119 = vpop.xlane.xlu0 %118
    %vm120 = vcmp.eq.s32.totalorder %v108, 1
    %v121 = vsel %vm120, %v119, %v114
    %s122 = scalar_lea.vmem [#allocation2], 16
    %v123 = vld [vmem:[%s122] sm:$0xff]
    %v124 = vmul.f32 %v123, %v106
    %125 = vadd.xlane.f32.xlu0 %v124
    %v126 = vpop.xlane.xlu0 %125
    %vm127 = vcmp.eq.s32.totalorder %v108, 2
    %v128 = vsel %vm127, %v126, %v121
    %s129 = scalar_lea.vmem [#allocation2], 24
    %v130 = vld [vmem:[%s129] sm:$0xff]
    %v131 = vmul.f32 %v130, %v106
    %132 = vadd.xlane.f32.xlu0 %v131
    %v133 = vpop.xlane.xlu0 %132
    %vm134 = vcmp.eq.s32.totalorder %v108, 3
    %v135 = vsel %vm134, %v133, %v128
    %s136 = scalar_lea.vmem [#allocation2], 32
    %v137 = vld [vmem:[%s136] sm:$0xff]
    %v138 = vmul.f32 %v137, %v106
    %139 = vadd.xlane.f32.xlu0 %v138
    %v140 = vpop.xlane.xlu0 %139
    %vm141 = vcmp.eq.s32.totalorder %v108, 4
    %v142 = vsel %vm141, %v140, %v135
    %s143 = scalar_lea.vmem [#allocation2], 40
    %v144 = vld [vmem:[%s143] sm:$0xff]
    %v145 = vmul.f32 %v144, %v106
    %146 = vadd.xlane.f32.xlu0 %v145
    %v147 = vpop.xlane.xlu0 %146
    %vm148 = vcmp.eq.s32.totalorder %v108, 5
    %v149 = vsel %vm148, %v147, %v142
    %s150 = scalar_lea.vmem [#allocation2], 48
    %v151 = vld [vmem:[%s150] sm:$0xff]
    %v152 = vmul.f32 %v151, %v106
    %153 = vadd.xlane.f32.xlu0 %v152
    %v154 = vpop.xlane.xlu0 %153
    %vm155 = vcmp.eq.s32.totalorder %v108, 6
    %v156 = vsel %vm155, %v154, %v149
    %s157 = scalar_lea.vmem [#allocation2], 56
    %v158 = vld [vmem:[%s157] sm:$0xff]
    %v159 = vmul.f32 %v158, %v106
    %160 = vadd.xlane.f32.xlu0 %v159
    %v161 = vpop.xlane.xlu0 %160
    %vm162 = vcmp.eq.s32.totalorder %v108, 7
    %v163 = vsel %vm162, %v161, %v156
    %vm164 = vcmask 64512
    %v165 = vsel %vm164, %v163, -inf
    %166 = vmax.xlane.f32.xlu0 %v165
    %v167 = vpop.xlane.xlu0 %166
    %v168 = vsub.f32 %v163, %v167
    %v169 = vmul.f32 %v168, 1.442695
    %v170 = vpow.pop %v169
    %v171 = vsel %vm164, %v170, 0.0
    %172 = vadd.xlane.f32.xlu0 %v171
    %v173 = vpop.xlane.xlu0 %172
    %v174 = vrcp.pop %v173
    %v175 = vmul.f32 %v170, %v174
    %176 = vst.msk [vmem:[#allocation14] sm:$0xff] %vm164, %v175
    %v177 = vld [vmem:[#allocation2] sm:$0xff]
    %v178 = vsel %vm113, %v175, 0.0
    %v179 = vsel %vm164, %v178, 0.0
    %180 = vadd.xlane.f32.xlu0 %v179
    %v181 = vpop.xlane.xlu0 %180
    %v182 = vmul.f32 %v181, %v177
    %v183 = vadd.f32 %v182, 0.0
    %v184 = vld [vmem:[%s115] sm:$0xff]
    %v185 = vsel %vm120, %v175, 0.0
    %v186 = vsel %vm164, %v185, 0.0
    %187 = vadd.xlane.f32.xlu0 %v186
    %v188 = vpop.xlane.xlu0 %187
    %v189 = vmul.f32 %v188, %v184
    %v190 = vadd.f32 %v183, %v189
    %v191 = vld [vmem:[%s122] sm:$0xff]
    %v192 = vsel %vm127, %v175, 0.0
    %v193 = vsel %vm164, %v192, 0.0
    %194 = vadd.xlane.f32.xlu0 %v193
    %v195 = vpop.xlane.xlu0 %194
    %v196 = vmul.f32 %v195, %v191
    %v197 = vadd.f32 %v190, %v196
    %v198 = vld [vmem:[%s129] sm:$0xff]
    %v199 = vsel %vm134, %v175, 0.0
    %v200 = vsel %vm164, %v199, 0.0
    %201 = vadd.xlane.f32.xlu0 %v200
    %v202 = vpop.xlane.xlu0 %201
    %v203 = vmul.f32 %v202, %v198
    %v204 = vadd.f32 %v197, %v203
    %v205 = vld [vmem:[%s136] sm:$0xff]
    %v206 = vsel %vm141, %v175, 0.0
    %v207 = vsel %vm164, %v206, 0.0
    %208 = vadd.xlane.f32.xlu0 %v207
    %v209 = vpop.xlane.xlu0 %208
    %v210 = vmul.f32 %v209, %v205
    %v211 = vadd.f32 %v204, %v210
    %v212 = vld [vmem:[%s143] sm:$0xff]
    %v213 = vsel %vm148, %v175, 0.0
    %v214 = vsel %vm164, %v213, 0.0
    %215 = vadd.xlane.f32.xlu0 %v214
    %v216 = vpop.xlane.xlu0 %215
    %v217 = vmul.f32 %v216, %v212
    %v218 = vadd.f32 %v211, %v217
    %v219 = vld [vmem:[%s150] sm:$0xff]
    %v220 = vsel %vm155, %v175, 0.0
    %v221 = vsel %vm164, %v220, 0.0
    %222 = vadd.xlane.f32.xlu0 %v221
    %v223 = vpop.xlane.xlu0 %222
    %v224 = vmul.f32 %v223, %v219
    %v225 = vadd.f32 %v218, %v224
    %v226 = vld [vmem:[%s157] sm:$0xff]
    %v227 = vsel %vm162, %v175, 0.0
    %v228 = vsel %vm164, %v227, 0.0
    %229 = vadd.xlane.f32.xlu0 %v228
    %v230 = vpop.xlane.xlu0 %229
    %v231 = vmul.f32 %v230, %v226
    %v232 = vadd.f32 %v225, %v231
    %v233 = vpack.c.bf16 %v232, %v232
    %v234 = vpack.c.bf16 %v106, %v106
    %v235 = vld [vmem:[#allocation11] sm:$0x1]
    %v236 = vld [vmem:[#allocation7] sm:$0xf]
    %v237 = vld [vmem:[#allocation7 + $0x4] sm:$0xf]
    %v238 = vld [vmem:[#allocation7 + $0x8] sm:$0xf]
    %v239 = vld [vmem:[#allocation7 + $0xc] sm:$0xf]
    %v240 = vld [vmem:[#allocation7 + $0x10] sm:$0xf]
    %v241 = vld [vmem:[#allocation7 + $0x14] sm:$0xf]
    %v242 = vld [vmem:[#allocation7 + $0x18] sm:$0xf]
    %v243 = vld [vmem:[#allocation7 + $0x1c] sm:$0xf]
    %v244 = vld [vmem:[#allocation7 + $0x20] sm:$0xf]
    %v245 = vld [vmem:[#allocation7 + $0x24] sm:$0xf]
    %v246 = vld [vmem:[#allocation7 + $0x28] sm:$0xf]
    %v247 = vld [vmem:[#allocation7 + $0x2c] sm:$0xf]
    %v248 = vld [vmem:[#allocation7 + $0x30] sm:$0xf]
    %v249 = vld [vmem:[#allocation7 + $0x34] sm:$0xf]
    %v250 = vld [vmem:[#allocation7 + $0x38] sm:$0xf]
    %v251 = vld [vmem:[#allocation7 + $0x3c] sm:$0xf]
    %v252 = vld [vmem:[#allocation7 + $0x40] sm:$0xf]
    %v253 = vld [vmem:[#allocation7 + $0x44] sm:$0xf]
    %v254 = vld [vmem:[#allocation7 + $0x48] sm:$0xf]
    %v255 = vld [vmem:[#allocation7 + $0x4c] sm:$0xf]
    %v256 = vld [vmem:[#allocation7 + $0x50] sm:$0xf]
    %v257 = vld [vmem:[#allocation7 + $0x54] sm:$0xf]
    %v258 = vld [vmem:[#allocation7 + $0x58] sm:$0xf]
    %v259 = vld [vmem:[#allocation7 + $0x5c] sm:$0xf]
    %v260 = vld [vmem:[#allocation7 + $0x60] sm:$0xf]
    %v261 = vld [vmem:[#allocation7 + $0x64] sm:$0xf]
    %v262 = vld [vmem:[#allocation7 + $0x68] sm:$0xf]
    %v263 = vld [vmem:[#allocation7 + $0x6c] sm:$0xf]
    %v264 = vld [vmem:[#allocation7 + $0x70] sm:$0xf]
    %v265 = vld [vmem:[#allocation7 + $0x74] sm:$0xf]
    %v266 = vld [vmem:[#allocation7 + $0x78] sm:$0xf]
    %v267 = vld [vmem:[#allocation7 + $0x7c] sm:$0xf]
    %v268 = vlaneseq
    %v269 = vshrl.u32 %v268, 7
    %v270 = vsub.s32 0, %v269
    %v271 = vrot.slane %v235, %v270
    %v304 = vunpack.c.l.b16 %v236
    %v305 = vunpack.c.l.b16 %v237
    %v306 = vunpack.c.l.b16 %v238
    %v307 = vunpack.c.l.b16 %v239
    %v308 = vunpack.c.l.b16 %v240
    %v309 = vunpack.c.l.b16 %v241
    %v310 = vunpack.c.l.b16 %v242
    %v311 = vunpack.c.l.b16 %v243
    %v312 = vunpack.c.l.b16 %v244
    %v313 = vunpack.c.l.b16 %v245
    %v314 = vunpack.c.l.b16 %v246
    %v315 = vunpack.c.l.b16 %v247
    %v316 = vunpack.c.l.b16 %v248
    %v317 = vunpack.c.l.b16 %v249
    %v318 = vunpack.c.l.b16 %v250
    %v319 = vunpack.c.l.b16 %v251
    %v320 = vunpack.c.l.b16 %v252
    %v321 = vunpack.c.l.b16 %v253
    %v322 = vunpack.c.l.b16 %v254
    %v323 = vunpack.c.l.b16 %v255
    %v324 = vunpack.c.l.b16 %v256
    %v325 = vunpack.c.l.b16 %v257
    %v326 = vunpack.c.l.b16 %v258
    %v327 = vunpack.c.l.b16 %v259
    %v328 = vunpack.c.l.b16 %v260
    %v329 = vunpack.c.l.b16 %v261
    %v330 = vunpack.c.l.b16 %v262
    %v331 = vunpack.c.l.b16 %v263
    %v332 = vunpack.c.l.b16 %v264
    %v333 = vunpack.c.l.b16 %v265
    %v334 = vunpack.c.l.b16 %v266
    %v335 = vunpack.c.l.b16 %v267
    %v336 = vpack.c.b16 %v305, %v304
    %v337 = vpack.c.b16 %v307, %v306
    %v338 = vpack.c.b16 %v309, %v308
    %v339 = vpack.c.b16 %v311, %v310
    %v340 = vpack.c.b16 %v313, %v312
    %v341 = vpack.c.b16 %v315, %v314
    %v342 = vpack.c.b16 %v317, %v316
    %v343 = vpack.c.b16 %v319, %v318
    %v344 = vpack.c.b16 %v321, %v320
    %v345 = vpack.c.b16 %v323, %v322
    %v346 = vpack.c.b16 %v325, %v324
    %v347 = vpack.c.b16 %v327, %v326
    %v348 = vpack.c.b16 %v329, %v328
    %v349 = vpack.c.b16 %v331, %v330
    %v350 = vpack.c.b16 %v333, %v332
    %v351 = vpack.c.b16 %v335, %v334
    %368 = vmatprep.subr.bf16.mxu0 0
    %369 = vmatpush1.bf16.msra.mxu0 %v343
    %370 = vmatprep.subr.bf16.mxu0 0
    %371 = vmatpush1.bf16.msra.mxu0 %v342
    %372 = vmatprep.subr.bf16.mxu0 0
    %373 = vmatpush1.bf16.msra.mxu0 %v341
    %374 = vmatprep.subr.bf16.mxu0 0
    %375 = vmatpush1.bf16.msra.mxu0 %v340
    %376 = vmatprep.subr.bf16.mxu0 0
    %377 = vmatpush1.bf16.msra.mxu0 %v339
    %378 = vmatprep.subr.bf16.mxu0 0
    %379 = vmatpush1.bf16.msra.mxu0 %v338
    %380 = vmatprep.subr.bf16.mxu0 0
    %381 = vmatpush1.bf16.msra.mxu0 %v337
    %382 = vmatprep.subr.bf16.mxu0 0
    %383 = vmatpush1.bf16.msra.mxu0 %v336
    %384 = vmatprep.subr.bf16.mxu0 0
    %385 = vmatpush2.bf16.msra.mxu0 %v351
    %386 = vmatprep.subr.bf16.mxu0 0
    %387 = vmatpush2.bf16.msra.mxu0 %v350
    %388 = vmatprep.subr.bf16.mxu0 0
    %389 = vmatpush2.bf16.msra.mxu0 %v349
    %390 = vmatprep.subr.bf16.mxu0 0
    %391 = vmatpush2.bf16.msra.mxu0 %v348
    %392 = vmatprep.subr.bf16.mxu0 0
    %393 = vmatpush2.bf16.msra.mxu0 %v347
    %394 = vmatprep.subr.bf16.mxu0 0
    %395 = vmatpush2.bf16.msra.mxu0 %v346
    %396 = vmatprep.subr.bf16.mxu0 0
    %397 = vmatpush2.bf16.msra.mxu0 %v345
    %398 = vmatprep.subr.bf16.mxu0 0
    %399 = vmatpush2.bf16.msra.mxu0 %v344
    %400 = vmatprep.mubr.bf16.mxu0 %v234
    %401 = vmatmul.mubr.bf16.gmra.mxu0 %v233
    %v402 = vpop.f32.mrf.mxu0
    %v403 = vadd.f32 %v271, %v402
    %v404 = vpop.f32.mrf.mxu0
    %v405 = vpop.f32.mrf.mxu0
    %v406 = vpop.f32.mrf.mxu0
    %407 = vdwg.mxu0
    %v408 = vtanh.pop %v403
    %v409 = vpack.c.bf16 %v408, %v408
    %v410 = vld [vmem:[#allocation8] sm:$0xff]
    %v411 = vld [vmem:[#allocation8 + $0x8] sm:$0xf]
    %v412 = vld [vmem:[#allocation8 + $0xc] sm:$0xff]
    %v413 = vld [vmem:[#allocation8 + $0x14] sm:$0xf]
    %v414 = vld [vmem:[#allocation8 + $0x18] sm:$0xff]
    %v415 = vld [vmem:[#allocation8 + $0x20] sm:$0xf]
    %v416 = vld [vmem:[#allocation8 + $0x24] sm:$0xff]
    %v417 = vld [vmem:[#allocation8 + $0x2c] sm:$0xf]
    %v418 = vld [vmem:[#allocation8 + $0x30] sm:$0xff]
    %v419 = vld [vmem:[#allocation8 + $0x38] sm:$0xf]
    %v420 = vld [vmem:[#allocation8 + $0x3c] sm:$0xff]
    %v421 = vld [vmem:[#allocation8 + $0x44] sm:$0xf]
    %v422 = vld [vmem:[#allocation8 + $0x48] sm:$0xff]
    %v423 = vld [vmem:[#allocation8 + $0x50] sm:$0xf]
    %v424 = vld [vmem:[#allocation8 + $0x54] sm:$0xff]
    %v425 = vld [vmem:[#allocation8 + $0x5c] sm:$0xf]
    %v426 = vld [vmem:[#allocation8 + $0x60] sm:$0xff]
    %v427 = vld [vmem:[#allocation8 + $0x68] sm:$0xf]
    %v428 = vld [vmem:[#allocation8 + $0x6c] sm:$0xff]
    %v429 = vld [vmem:[#allocation8 + $0x74] sm:$0xf]
    %v430 = vld [vmem:[#allocation8 + $0x78] sm:$0xff]
    %v431 = vld [vmem:[#allocation8 + $0x80] sm:$0xf]
    %v432 = vld [vmem:[#allocation8 + $0x84] sm:$0xff]
    %v433 = vld [vmem:[#allocation8 + $0x8c] sm:$0xf]
    %v434 = vld [vmem:[#allocation8 + $0x90] sm:$0xff]
    %v435 = vld [vmem:[#allocation8 + $0x98] sm:$0xf]
    %v436 = vld [vmem:[#allocation8 + $0x9c] sm:$0xff]
    %v437 = vld [vmem:[#allocation8 + $0xa4] sm:$0xf]
    %v438 = vld [vmem:[#allocation8 + $0xa8] sm:$0xff]
    %v439 = vld [vmem:[#allocation8 + $0xb0] sm:$0xf]
    %v440 = vld [vmem:[#allocation8 + $0xb4] sm:$0xff]
    %v441 = vld [vmem:[#allocation8 + $0xbc] sm:$0xf]
    %s442 = scalar_lea.vmem [#allocation11], 1
    %v443 = vld [vmem:[%s442] ss:$4 sm:$0x7]
    %v445 = vlaneseq
    %v446 = vshrl.u32 %v445, 7
    %v447 = vsub.s32 0, %v446
    %v448 = vrot.slane %v443, %v447
    %v449 = vlaneseq
    %v450 = vshrl.u32 %v449, 7
    %v451 = vsub.s32 1, %v450
    %v452 = vrot.slane %v443, %v451
    %v453 = vlaneseq
    %v454 = vshrl.u32 %v453, 7
    %v455 = vsub.s32 2, %v454
    %v456 = vrot.slane %v443, %v455
    %v492 = vunpack.c.l.b16 %v410
    %v493 = vunpack.c.h.b16 %v410
    %v494 = vunpack.c.l.b16 %v411
    %v495 = vunpack.c.l.b16 %v412
    %v496 = vunpack.c.h.b16 %v412
    %v497 = vunpack.c.l.b16 %v413
    %v498 = vunpack.c.l.b16 %v414
    %v499 = vunpack.c.h.b16 %v414
    %v500 = vunpack.c.l.b16 %v415
    %v501 = vunpack.c.l.b16 %v416
    %v502 = vunpack.c.h.b16 %v416
    %v503 = vunpack.c.l.b16 %v417
    %v504 = vunpack.c.l.b16 %v418
    %v505 = vunpack.c.h.b16 %v418
    %v506 = vunpack.c.l.b16 %v419
    %v507 = vunpack.c.l.b16 %v420
    %v508 = vunpack.c.h.b16 %v420
    %v509 = vunpack.c.l.b16 %v421
    %v510 = vunpack.c.l.b16 %v422
    %v511 = vunpack.c.h.b16 %v422
    %v512 = vunpack.c.l.b16 %v423
    %v513 = vunpack.c.l.b16 %v424
    %v514 = vunpack.c.h.b16 %v424
    %v515 = vunpack.c.l.b16 %v425
    %v516 = vunpack.c.l.b16 %v426
    %v517 = vunpack.c.h.b16 %v426
    %v518 = vunpack.c.l.b16 %v427
    %v519 = vunpack.c.l.b16 %v428
    %v520 = vunpack.c.h.b16 %v428
    %v521 = vunpack.c.l.b16 %v429
    %v522 = vunpack.c.l.b16 %v430
    %v523 = vunpack.c.h.b16 %v430
    %v524 = vunpack.c.l.b16 %v431
    %v525 = vunpack.c.l.b16 %v432
    %v526 = vunpack.c.h.b16 %v432
    %v527 = vunpack.c.l.b16 %v433
    %v528 = vunpack.c.l.b16 %v434
    %v529 = vunpack.c.h.b16 %v434
    %v530 = vunpack.c.l.b16 %v435
    %v531 = vunpack.c.l.b16 %v436
    %v532 = vunpack.c.h.b16 %v436
    %v533 = vunpack.c.l.b16 %v437
    %v534 = vunpack.c.l.b16 %v438
    %v535 = vunpack.c.h.b16 %v438
    %v536 = vunpack.c.l.b16 %v439
    %v537 = vunpack.c.l.b16 %v440
    %v538 = vunpack.c.h.b16 %v440
    %v539 = vunpack.c.l.b16 %v441
    %v540 = vpack.c.b16 %v495, %v492
    %v541 = vpack.c.b16 %v496, %v493
    %v542 = vpack.c.b16 %v497, %v494
    %v543 = vpack.c.b16 %v501, %v498
    %v544 = vpack.c.b16 %v502, %v499
    %v545 = vpack.c.b16 %v503, %v500
    %v546 = vpack.c.b16 %v507, %v504
    %v547 = vpack.c.b16 %v508, %v505
    %v548 = vpack.c.b16 %v509, %v506
    %v549 = vpack.c.b16 %v513, %v510
    %v550 = vpack.c.b16 %v514, %v511
    %v551 = vpack.c.b16 %v515, %v512
    %v552 = vpack.c.b16 %v519, %v516
    %v553 = vpack.c.b16 %v520, %v517
    %v554 = vpack.c.b16 %v521, %v518
    %v555 = vpack.c.b16 %v525, %v522
    %v556 = vpack.c.b16 %v526, %v523
    %v557 = vpack.c.b16 %v527, %v524
    %v558 = vpack.c.b16 %v531, %v528
    %v559 = vpack.c.b16 %v532, %v529
    %v560 = vpack.c.b16 %v533, %v530
    %v561 = vpack.c.b16 %v537, %v534
    %v562 = vpack.c.b16 %v538, %v535
    %v563 = vpack.c.b16 %v539, %v536
    %588 = vmatprep.subr.bf16.mxu0 %v562
    %589 = vmatpush1.bf16.msra.mxu0 %v561
    %590 = vmatprep.subr.bf16.mxu0 %v559
    %591 = vmatpush1.bf16.msra.mxu0 %v558
    %592 = vmatprep.subr.bf16.mxu0 %v556
    %593 = vmatpush1.bf16.msra.mxu0 %v555
    %594 = vmatprep.subr.bf16.mxu0 %v553
    %595 = vmatpush1.bf16.msra.mxu0 %v552
    %596 = vmatprep.subr.bf16.mxu0 %v550
    %597 = vmatpush1.bf16.msra.mxu0 %v549
    %598 = vmatprep.subr.bf16.mxu0 %v547
    %599 = vmatpush1.bf16.msra.mxu0 %v546
    %600 = vmatprep.subr.bf16.mxu0 %v544
    %601 = vmatpush1.bf16.msra.mxu0 %v543
    %602 = vmatprep.subr.bf16.mxu0 %v541
    %603 = vmatpush1.bf16.msra.mxu0 %v540
    %604 = vmatprep.subr.bf16.mxu0 0
    %605 = vmatpush2.bf16.msra.mxu0 0
    %606 = vmatprep.subr.bf16.mxu0 0
    %607 = vmatpush2.bf16.msra.mxu0 0
    %608 = vmatprep.subr.bf16.mxu0 0
    %609 = vmatpush2.bf16.msra.mxu0 0
    %610 = vmatprep.subr.bf16.mxu0 0
    %611 = vmatpush2.bf16.msra.mxu0 0
    %612 = vmatprep.subr.bf16.mxu0 0
    %613 = vmatpush2.bf16.msra.mxu0 0
    %614 = vmatprep.subr.bf16.mxu0 0
    %615 = vmatpush2.bf16.msra.mxu0 0
    %616 = vmatprep.subr.bf16.mxu0 0
    %617 = vmatpush2.bf16.msra.mxu0 0
    %618 = vmatprep.subr.bf16.mxu0 0
    %619 = vmatpush2.bf16.msra.mxu0 0
    %620 = vmatprep.mubr.bf16.mxu0 0
    %621 = vmatmul.mubr.bf16.gmra.mxu0 %v409
    %v622 = vpop.f32.mrf.mxu0
    %v623 = vadd.f32 %v448, %v622
    %v624 = vpop.f32.mrf.mxu0
    %v625 = vadd.f32 %v452, %v624
    %v626 = vpop.f32.mrf.mxu0
    %v627 = vpop.f32.mrf.mxu0
    %628 = vdwg.mxu0
    %629 = vmatprep.subr.bf16.mxu0 0
    %630 = vmatpush1.bf16.msra.mxu0 %v563
    %631 = vmatprep.subr.bf16.mxu0 0
    %632 = vmatpush1.bf16.msra.mxu0 %v560
    %633 = vmatprep.subr.bf16.mxu0 0
    %634 = vmatpush1.bf16.msra.mxu0 %v557
    %635 = vmatprep.subr.bf16.mxu0 0
    %636 = vmatpush1.bf16.msra.mxu0 %v554
    %637 = vmatprep.subr.bf16.mxu0 0
    %638 = vmatpush1.bf16.msra.mxu0 %v551
    %639 = vmatprep.subr.bf16.mxu0 0
    %640 = vmatpush1.bf16.msra.mxu0 %v548
    %641 = vmatprep.subr.bf16.mxu0 0
    %642 = vmatpush1.bf16.msra.mxu0 %v545
    %643 = vmatprep.subr.bf16.mxu0 0
    %644 = vmatpush1.bf16.msra.mxu0 %v542
    %645 = vmatprep.subr.bf16.mxu0 0
    %646 = vmatpush2.bf16.msra.mxu0 0
    %647 = vmatprep.subr.bf16.mxu0 0
    %648 = vmatpush2.bf16.msra.mxu0 0
    %649 = vmatprep.subr.bf16.mxu0 0
    %650 = vmatpush2.bf16.msra.mxu0 0
    %651 = vmatprep.subr.bf16.mxu0 0
    %652 = vmatpush2.bf16.msra.mxu0 0
    %653 = vmatprep.subr.bf16.mxu0 0
    %654 = vmatpush2.bf16.msra.mxu0 0
    %655 = vmatprep.subr.bf16.mxu0 0
    %656 = vmatpush2.bf16.msra.mxu0 0
    %657 = vmatprep.subr.bf16.mxu0 0
    %658 = vmatpush2.bf16.msra.mxu0 0
    %659 = vmatprep.subr.bf16.mxu0 0
    %660 = vmatpush2.bf16.msra.mxu0 0
    %661 = vmatprep.mubr.bf16.mxu0 0
    %662 = vmatmul.mubr.bf16.gmra.mxu0 %v409
    %v663 = vpop.f32.mrf.mxu0
    %v664 = vadd.f32 %v456, %v663
    %v665 = vpop.f32.mrf.mxu0
    %v666 = vpop.f32.mrf.mxu0
    %v667 = vpop.f32.mrf.mxu0
    %668 = vdwg.mxu0
    %v669 = vld [vmem:[#allocation10] sm:$0xff]
    %v670 = vld [vmem:[#allocation10 + $0x8] sm:$0xf]
    %v671 = vld [vmem:[#allocation10 + $0xc] sm:$0xff]
    %v672 = vld [vmem:[#allocation10 + $0x14] sm:$0xf]
    %v673 = vld [vmem:[#allocation10 + $0x18] sm:$0xff]
    %v674 = vld [vmem:[#allocation10 + $0x20] sm:$0xf]
    %v675 = vld [vmem:[#allocation10 + $0x24] sm:$0xff]
    %v676 = vld [vmem:[#allocation10 + $0x2c] sm:$0xf]
    %v677 = vld [vmem:[#allocation10 + $0x30] sm:$0xff]
    %v678 = vld [vmem:[#allocation10 + $0x38] sm:$0xf]
    %v679 = vld [vmem:[#allocation10 + $0x3c] sm:$0xff]
    %v680 = vld [vmem:[#allocation10 + $0x44] sm:$0xf]
    %v681 = vld [vmem:[#allocation10 + $0x48] sm:$0xff]
    %v682 = vld [vmem:[#allocation10 + $0x50] sm:$0xf]
    %v683 = vld [vmem:[#allocation10 + $0x54] sm:$0xff]
    %v684 = vld [vmem:[#allocation10 + $0x5c] sm:$0xf]
    %v685 = vld [vmem:[#allocation10 + $0x60] sm:$0xff]
    %v686 = vld [vmem:[#allocation10 + $0x68] sm:$0xf]
    %v687 = vld [vmem:[#allocation10 + $0x6c] sm:$0xff]
    %v688 = vld [vmem:[#allocation10 + $0x74] sm:$0xf]
    %v689 = vld [vmem:[#allocation10 + $0x78] sm:$0xff]
    %v690 = vld [vmem:[#allocation10 + $0x80] sm:$0xf]
    %v691 = vld [vmem:[#allocation10 + $0x84] sm:$0xff]
    %v692 = vld [vmem:[#allocation10 + $0x8c] sm:$0xf]
    %v693 = vld [vmem:[#allocation10 + $0x90] sm:$0xff]
    %v694 = vld [vmem:[#allocation10 + $0x98] sm:$0xf]
    %v695 = vld [vmem:[#allocation10 + $0x9c] sm:$0xff]
    %v696 = vld [vmem:[#allocation10 + $0xa4] sm:$0xf]
    %v697 = vld [vmem:[#allocation10 + $0xa8] sm:$0xff]
    %v698 = vld [vmem:[#allocation10 + $0xb0] sm:$0xf]
    %v699 = vld [vmem:[#allocation10 + $0xb4] sm:$0xff]
    %v700 = vld [vmem:[#allocation10 + $0xbc] sm:$0xf]
    %s701 = scalar_lea.vmem [#allocation11], 2
    %v702 = vld [vmem:[%s701] ss:$4 sm:$0x7]
    %v704 = vlaneseq
    %v705 = vshrl.u32 %v704, 7
    %v706 = vsub.s32 0, %v705
    %v707 = vrot.slane %v702, %v706
    %v708 = vlaneseq
    %v709 = vshrl.u32 %v708, 7
    %v710 = vsub.s32 1, %v709
    %v711 = vrot.slane %v702, %v710
    %v712 = vlaneseq
    %v713 = vshrl.u32 %v712, 7
    %v714 = vsub.s32 2, %v713
    %v715 = vrot.slane %v702, %v714
    %v751 = vunpack.c.l.b16 %v669
    %v752 = vunpack.c.h.b16 %v669
    %v753 = vunpack.c.l.b16 %v670
    %v754 = vunpack.c.l.b16 %v671
    %v755 = vunpack.c.h.b16 %v671
    %v756 = vunpack.c.l.b16 %v672
    %v757 = vunpack.c.l.b16 %v673
    %v758 = vunpack.c.h.b16 %v673
    %v759 = vunpack.c.l.b16 %v674
    %v760 = vunpack.c.l.b16 %v675
    %v761 = vunpack.c.h.b16 %v675
    %v762 = vunpack.c.l.b16 %v676
    %v763 = vunpack.c.l.b16 %v677
    %v764 = vunpack.c.h.b16 %v677
    %v765 = vunpack.c.l.b16 %v678
    %v766 = vunpack.c.l.b16 %v679
    %v767 = vunpack.c.h.b16 %v679
    %v768 = vunpack.c.l.b16 %v680
    %v769 = vunpack.c.l.b16 %v681
    %v770 = vunpack.c.h.b16 %v681
    %v771 = vunpack.c.l.b16 %v682
    %v772 = vunpack.c.l.b16 %v683
    %v773 = vunpack.c.h.b16 %v683
    %v774 = vunpack.c.l.b16 %v684
    %v775 = vunpack.c.l.b16 %v685
    %v776 = vunpack.c.h.b16 %v685
    %v777 = vunpack.c.l.b16 %v686
    %v778 = vunpack.c.l.b16 %v687
    %v779 = vunpack.c.h.b16 %v687
    %v780 = vunpack.c.l.b16 %v688
    %v781 = vunpack.c.l.b16 %v689
    %v782 = vunpack.c.h.b16 %v689
    %v783 = vunpack.c.l.b16 %v690
    %v784 = vunpack.c.l.b16 %v691
    %v785 = vunpack.c.h.b16 %v691
    %v786 = vunpack.c.l.b16 %v692
    %v787 = vunpack.c.l.b16 %v693
    %v788 = vunpack.c.h.b16 %v693
    %v789 = vunpack.c.l.b16 %v694
    %v790 = vunpack.c.l.b16 %v695
    %v791 = vunpack.c.h.b16 %v695
    %v792 = vunpack.c.l.b16 %v696
    %v793 = vunpack.c.l.b16 %v697
    %v794 = vunpack.c.h.b16 %v697
    %v795 = vunpack.c.l.b16 %v698
    %v796 = vunpack.c.l.b16 %v699
    %v797 = vunpack.c.h.b16 %v699
    %v798 = vunpack.c.l.b16 %v700
    %v799 = vpack.c.b16 %v754, %v751
    %v800 = vpack.c.b16 %v755, %v752
    %v801 = vpack.c.b16 %v756, %v753
    %v802 = vpack.c.b16 %v760, %v757
    %v803 = vpack.c.b16 %v761, %v758
    %v804 = vpack.c.b16 %v762, %v759
    %v805 = vpack.c.b16 %v766, %v763
    %v806 = vpack.c.b16 %v767, %v764
    %v807 = vpack.c.b16 %v768, %v765
    %v808 = vpack.c.b16 %v772, %v769
    %v809 = vpack.c.b16 %v773, %v770
    %v810 = vpack.c.b16 %v774, %v771
    %v811 = vpack.c.b16 %v778, %v775
    %v812 = vpack.c.b16 %v779, %v776
    %v813 = vpack.c.b16 %v780, %v777
    %v814 = vpack.c.b16 %v784, %v781
    %v815 = vpack.c.b16 %v785, %v782
    %v816 = vpack.c.b16 %v786, %v783
    %v817 = vpack.c.b16 %v790, %v787
    %v818 = vpack.c.b16 %v791, %v788
    %v819 = vpack.c.b16 %v792, %v789
    %v820 = vpack.c.b16 %v796, %v793
    %v821 = vpack.c.b16 %v797, %v794
    %v822 = vpack.c.b16 %v798, %v795
    %847 = vmatprep.subr.bf16.mxu0 %v821
    %848 = vmatpush1.bf16.msra.mxu0 %v820
    %849 = vmatprep.subr.bf16.mxu0 %v818
    %850 = vmatpush1.bf16.msra.mxu0 %v817
    %851 = vmatprep.subr.bf16.mxu0 %v815
    %852 = vmatpush1.bf16.msra.mxu0 %v814
    %853 = vmatprep.subr.bf16.mxu0 %v812
    %854 = vmatpush1.bf16.msra.mxu0 %v811
    %855 = vmatprep.subr.bf16.mxu0 %v809
    %856 = vmatpush1.bf16.msra.mxu0 %v808
    %857 = vmatprep.subr.bf16.mxu0 %v806
    %858 = vmatpush1.bf16.msra.mxu0 %v805
    %859 = vmatprep.subr.bf16.mxu0 %v803
    %860 = vmatpush1.bf16.msra.mxu0 %v802
    %861 = vmatprep.subr.bf16.mxu0 %v800
    %862 = vmatpush1.bf16.msra.mxu0 %v799
    %863 = vmatprep.subr.bf16.mxu0 0
    %864 = vmatpush2.bf16.msra.mxu0 0
    %865 = vmatprep.subr.bf16.mxu0 0
    %866 = vmatpush2.bf16.msra.mxu0 0
    %867 = vmatprep.subr.bf16.mxu0 0
    %868 = vmatpush2.bf16.msra.mxu0 0
    %869 = vmatprep.subr.bf16.mxu0 0
    %870 = vmatpush2.bf16.msra.mxu0 0
    %871 = vmatprep.subr.bf16.mxu0 0
    %872 = vmatpush2.bf16.msra.mxu0 0
    %873 = vmatprep.subr.bf16.mxu0 0
    %874 = vmatpush2.bf16.msra.mxu0 0
    %875 = vmatprep.subr.bf16.mxu0 0
    %876 = vmatpush2.bf16.msra.mxu0 0
    %877 = vmatprep.subr.bf16.mxu0 0
    %878 = vmatpush2.bf16.msra.mxu0 0
    %879 = vmatprep.mubr.bf16.mxu0 0
    %880 = vmatmul.mubr.bf16.gmra.mxu0 %v234
    %v881 = vpop.f32.mrf.mxu0
    %v882 = vadd.f32 %v707, %v881
    %v883 = vpop.f32.mrf.mxu0
    %v884 = vadd.f32 %v711, %v883
    %v885 = vpop.f32.mrf.mxu0
    %v886 = vpop.f32.mrf.mxu0
    %887 = vdwg.mxu0
    %888 = vmatprep.subr.bf16.mxu0 0
    %889 = vmatpush1.bf16.msra.mxu0 %v822
    %890 = vmatprep.subr.bf16.mxu0 0
    %891 = vmatpush1.bf16.msra.mxu0 %v819
    %892 = vmatprep.subr.bf16.mxu0 0
    %893 = vmatpush1.bf16.msra.mxu0 %v816
    %894 = vmatprep.subr.bf16.mxu0 0
    %895 = vmatpush1.bf16.msra.mxu0 %v813
    %896 = vmatprep.subr.bf16.mxu0 0
    %897 = vmatpush1.bf16.msra.mxu0 %v810
    %898 = vmatprep.subr.bf16.mxu0 0
    %899 = vmatpush1.bf16.msra.mxu0 %v807
    %900 = vmatprep.subr.bf16.mxu0 0
    %901 = vmatpush1.bf16.msra.mxu0 %v804
    %902 = vmatprep.subr.bf16.mxu0 0
    %903 = vmatpush1.bf16.msra.mxu0 %v801
    %904 = vmatprep.subr.bf16.mxu0 0
    %905 = vmatpush2.bf16.msra.mxu0 0
    %906 = vmatprep.subr.bf16.mxu0 0
    %907 = vmatpush2.bf16.msra.mxu0 0
    %908 = vmatprep.subr.bf16.mxu0 0
    %909 = vmatpush2.bf16.msra.mxu0 0
    %910 = vmatprep.subr.bf16.mxu0 0
    %911 = vmatpush2.bf16.msra.mxu0 0
    %912 = vmatprep.subr.bf16.mxu0 0
    %913 = vmatpush2.bf16.msra.mxu0 0
    %914 = vmatprep.subr.bf16.mxu0 0
    %915 = vmatpush2.bf16.msra.mxu0 0
    %916 = vmatprep.subr.bf16.mxu0 0
    %917 = vmatpush2.bf16.msra.mxu0 0
    %918 = vmatprep.subr.bf16.mxu0 0
    %919 = vmatpush2.bf16.msra.mxu0 0
    %920 = vmatprep.mubr.bf16.mxu0 0
    %921 = vmatmul.mubr.bf16.gmra.mxu0 %v234
    %v922 = vpop.f32.mrf.mxu0
    %v923 = vadd.f32 %v715, %v922
    %v924 = vpop.f32.mrf.mxu0
    %v925 = vpop.f32.mrf.mxu0
    %v926 = vpop.f32.mrf.mxu0
    %927 = vdwg.mxu0
    %v928 = vadd.f32 %v623, %v882
    %v929 = vxor.u32 %v928, 2147483648
    %v930 = vmul.f32 %v929, 1.442695
    %v931 = vpow.pop %v930
    %v932 = vadd.f32 %v931, 1.0
    %v933 = vrcp.pop %v932
    %v934 = vmul.f32 1.0, %v933
    %v935 = vadd.f32 %v625, %v884
    %v936 = vxor.u32 %v935, 2147483648
    %v937 = vmul.f32 %v936, 1.442695
    %v938 = vpow.pop %v937
    %v939 = vadd.f32 %v938, 1.0
    %v940 = vrcp.pop %v939
    %v941 = vmul.f32 1.0, %v940
    %v942 = vmul.f32 %v934, %v923
    %v943 = vadd.f32 %v664, %v942
    %v944 = vtanh.pop %v943
    %v945 = vsub.f32 1.0, %v941
    %v946 = vmul.f32 %v945, %v944
    %v947 = vmul.f32 %v941, %v106
    %v948 = vadd.f32 %v946, %v947
    %949 = vst [vmem:[#allocation13] sm:$0xff] %v948
    // Predicated region
    $region50: #{tpu_custom_call.1} parent=1 // pred_check
      _
    $region51: #{tpu_custom_call.1} parent=1 // pred_check_branch
      %951 = sbr.rel (0) target = $region53
    $region52: #{tpu_custom_call.1} parent=1 // pred_region
      %s953 = ssub.s32 128, 128
      %954 = vsyncadd [#allocation4], %s953
      %s956 = sshll.u32 [#allocation13], 4
      %s957 = int_to_ptr.vmem [resolvable:$true] %s956
      %959 = dma.vmem_to_hbm [thread:$0]  %s957, 128, %s6, [#allocation4]
    $region53: #{tpu_custom_call.1} parent=1 // pred_fallthru
      _
    // Predicated region
    $region54: #{tpu_custom_call.1} parent=1 // pred_check
      _
    $region55: #{tpu_custom_call.1} parent=1 // pred_check_branch
      %961 = sbr.rel (0) target = $region57
    $region56: #{tpu_custom_call.1} parent=1 // pred_region
      %s963 = ssub.s32 128, 128
      %964 = vsyncadd [#allocation15], %s963
      %s966 = sshll.u32 [#allocation14], 4
      %s967 = int_to_ptr.vmem [resolvable:$true] %s966
      %969 = dma.vmem_to_hbm [thread:$0]  %s967, 128, %s7, [#allocation15]
    $region57: #{tpu_custom_call.1} parent=1 // pred_fallthru
      _
    // Predicated region
    $region58: #{tpu_custom_call.1} parent=1 // pred_check
      _
    $region59: #{tpu_custom_call.1} parent=1 // pred_check_branch
      %971 = sbr.rel (0) target = $region61
    $region60: #{tpu_custom_call.1} parent=1 // pred_region
      %972 = dma.done [#allocation4], 128
    $region61: #{tpu_custom_call.1} parent=1 // pred_fallthru
      _
    // Predicated region
    $region62: #{tpu_custom_call.1} parent=1 // pred_check
      _
    $region63: #{tpu_custom_call.1} parent=1 // pred_check_branch
      %974 = sbr.rel (0) target = $region65
    $region64: #{tpu_custom_call.1} parent=1 // pred_region
      %975 = dma.done [#allocation15], 128
    $region65: #{tpu_custom_call.1} parent=1 // pred_fallthru
      _
    %976 = vsyncpa [#allocation3], 1
    %977 = vsyncpa [#allocation6], 1
    %978 = vsyncpa [#allocation9], 1
    %979 = vsyncpa [#allocation12], 1
    %980 = vsyncpa [#allocation4], 1
    %981 = vsyncpa [#allocation15], 1

</llo_original>
